<compile_context>
chip_gen: v7x
topology: tpu7x:2x2x1
jax: 0.10.0
libtpu: 0.0.40
codegen_flags: <defaults>
</compile_context>

<pallas_src>
import jax
import jax.numpy as jnp
from jax.experimental import pallas as pl
from jax.experimental.pallas import tpu as pltpu


def se_conv_kernel(v_ref, w1t_ref, x_ref, w2_ref, o_ref):
    c_in = w1t_ref.shape[0] - 1          # last row of w1t holds the folded bias b1

    # SE gate, lane-major, on VPU/XLU/EUP (MXU only runs the projection):
    #   logit[0, c] = sum_i w1t[i, c] * v[i] + b1[c]        -> (1, C_mid) f32
    prod = w1t_ref[:c_in, :] * v_ref[...]                   # (C_in, C_mid) f32
    logit = jnp.sum(prod, axis=0, keepdims=True) + w1t_ref[c_in:, :]
    gate = jax.nn.sigmoid(logit)                            # (1, C_mid) f32, ~9 vregs

    # Fold the per-channel gate into the projection weight (sublane broadcast):
    #   (W2 * gate) @ x  ==  W2 @ (gate * x)
    w2g = w2_ref[...] * gate                                # (C_out, C_mid) f32

    # Projection 1x1 conv as one channel-major matmul on the MXU.
    # Default matmul precision: bf16 operand feed, f32 accumulation.
    o_ref[...] = jnp.dot(w2g, x_ref[...],
                         preferred_element_type=jnp.float32).astype(o_ref.dtype)


def prepare_weights(w1, b1, w2):
    """One-time weight prep (weight-load time, outside the per-step path)."""
    c_mid, c_in = w1.shape[0], w1.shape[1]
    c_out = w2.shape[0]
    # Gate weight: transpose to lane-major (C_in, C_mid) and fold the bias in
    # as an extra row -> (C_in + 1, C_mid), bf16 for HBM storage / DMA.
    w1t_aug = jnp.concatenate([w1.reshape(c_mid, c_in).T,
                               b1.reshape(1, c_mid)], axis=0).astype(jnp.bfloat16)
    # Projection weight: contiguous reshape only, bf16 for HBM storage / DMA.
    w2_m = w2.reshape(c_out, c_mid).astype(jnp.bfloat16)     # (224, 1152) bf16
    return w1t_aug, w2_m


def se_block(x284, x281, w1t_aug, w2_m):
    """x284: [1, 48, 1, 1], x281: [1, 1152, H, W] (NCHW). Returns [1, 224, H, W] bf16."""
    n, c_mid, h, w_sp = x281.shape
    assert n == 1  # TODO(synk): batch > 1 would add a leading grid axis
    c_in = x284.shape[1]
    c_aug = w1t_aug.shape[0]
    c_out = w2_m.shape[0]
    hw = h * w_sp

    # Channel-major views: contiguous reshapes only — no transpose, no cast of
    # the big activation (f32 goes straight into the kernel DMA).
    x_cm = x281.reshape(c_mid, hw)                   # (1152, 196) f32
    v = x284.reshape(c_in, 1).astype(jnp.float32)    # (48, 1)     f32

    out_cm = pl.pallas_call(
        se_conv_kernel,
        out_shape=jax.ShapeDtypeStruct((c_out, hw), jnp.bfloat16),
        grid_spec=pltpu.PrefetchScalarGridSpec(
            num_scalar_prefetch=0,
            grid=(1,),                               # single step: DMA/launch bound
            in_specs=[
                pl.BlockSpec((c_in, 1),      lambda i: (0, 0)),   # v   (squeeze vec)
                pl.BlockSpec((c_aug, c_mid), lambda i: (0, 0)),   # w1t (+ bias row)
                pl.BlockSpec((c_mid, hw),    lambda i: (0, 0)),   # x   (raw f32)
                pl.BlockSpec((c_out, c_mid), lambda i: (0, 0)),   # w2  (bf16)
            ],
            out_specs=pl.BlockSpec((c_out, hw), lambda i: (0, 0)),
        ),
        compiler_params=pltpu.CompilerParams(
            dimension_semantics=("arbitrary",)),
    )(v, w1t_aug, x_cm, w2_m)

    # Channel-major result reshapes straight back to NCHW (no transpose).
    return out_cm.reshape(1, c_out, h, w_sp)


def reference(x284, x281, w1, b1, w2):
    # Plain-JAX f32 reference of the same math (1x1 convs as einsums).
    s = jax.nn.sigmoid(
        jnp.einsum('oi,ni->no', w1.reshape(w1.shape[0], w1.shape[1]),
                   x284.reshape(1, -1)) + b1[None, :])            # (1, 1152)
    y = x281 * s[0][None, :, None, None]
    return jnp.einsum('oi,nihw->nohw', w2.reshape(w2.shape[0], w2.shape[1]), y)


if __name__ == "__main__":
    key = jax.random.PRNGKey(0)
    k1, k2, k3, k4, k5 = jax.random.split(key, 5)

    C_IN, C_MID, C_OUT, H, W = 48, 1152, 224, 14, 14

    # Inputs (module's forward signature: forward(x284, x281)).
    x284 = jax.random.normal(k1, (1, C_IN, 1, 1), jnp.float32)
    x281 = jax.random.normal(k2, (1, C_MID, H, W), jnp.float32)

    # Deterministic parameter init (synthetic, PyTorch Conv2d weight layouts).
    w1 = jax.random.normal(k3, (C_MID, C_IN, 1, 1), jnp.float32) * 0.05
    b1 = jax.random.normal(k4, (C_MID,), jnp.float32) * 0.05
    w2 = jax.random.normal(k5, (C_OUT, C_MID, 1, 1), jnp.float32) * 0.02

    # Weight prep happens once, outside the jitted per-step path.
    w1t_aug, w2_m = prepare_weights(w1, b1, w2)

    out = jax.jit(se_block)(x284, x281, w1t_aug, w2_m)
    out = jax.block_until_ready(out)
    assert out.shape == (1, C_OUT, H, W), out.shape
    assert out.dtype == jnp.bfloat16

    # f32 reference; tolerance covers bf16 weights, bf16 MXU feed and the bf16
    # output cast (gate math and accumulation remain f32).
    ref = reference(x284, x281, w1, b1, w2)
    assert jnp.allclose(out.astype(jnp.float32), ref, atol=3e-2, rtol=3e-2)

    print("KERNEL_OK")
</pallas_src>

<mosaic_0001>
module attributes {stable_mosaic.version = 11 : i64} {
  func.func @se_conv_kernel(%arg0: i32, %arg1: memref<48x1xf32, #tpu.memory_space<vmem>>, %arg2: memref<49x1152xbf16, #tpu.memory_space<vmem>>, %arg3: memref<1152x196xf32, #tpu.memory_space<vmem>>, %arg4: memref<224x1152xbf16, #tpu.memory_space<vmem>>, %arg5: memref<224x196xbf16, #tpu.memory_space<vmem>>) attributes {dimension_semantics = [#tpu.dimension_semantics<arbitrary>], iteration_bounds = array<i64: 1>, scalar_prefetch = 0 : i64, scratch_operands = 0 : i64, tpu.core_type = #tpu.core_type<tc>, window_params = [{pipeline_mode = #tpu.pipeline_mode<synchronous>, transform_indices = @transform_0, window_bounds = array<i64: 48, 1>}, {pipeline_mode = #tpu.pipeline_mode<synchronous>, transform_indices = @transform_1, window_bounds = array<i64: 49, 1152>}, {pipeline_mode = #tpu.pipeline_mode<synchronous>, transform_indices = @transform_2, window_bounds = array<i64: 1152, 196>}, {pipeline_mode = #tpu.pipeline_mode<synchronous>, transform_indices = @transform_3, window_bounds = array<i64: 224, 1152>}, {pipeline_mode = #tpu.pipeline_mode<synchronous>, transform_indices = @transform_4, window_bounds = array<i64: 224, 196>}]} {
    %c0 = arith.constant 0 : index
    %c0_0 = arith.constant 0 : index
    %0 = vector.load %arg2[%c0, %c0_0] : memref<49x1152xbf16, #tpu.memory_space<vmem>>, vector<48x1152xbf16>
    %c0_1 = arith.constant 0 : index
    %c0_2 = arith.constant 0 : index
    %1 = vector.load %arg1[%c0_1, %c0_2] : memref<48x1xf32, #tpu.memory_space<vmem>>, vector<48x1xf32>
    %2 = arith.extf %0 : vector<48x1152xbf16> to vector<48x1152xf32>
    %3 = vector.broadcast %1 : vector<48x1xf32> to vector<48x1152xf32>
    %4 = arith.mulf %2, %3 : vector<48x1152xf32>
    %cst = arith.constant dense<0.000000e+00> : vector<1152xf32>
    %5 = vector.multi_reduction <add>, %4, %cst [0] : vector<48x1152xf32> to vector<1152xf32>
    %6 = vector.shape_cast %5 : vector<1152xf32> to vector<1x1152xf32>
    %c48 = arith.constant 48 : index
    %c0_3 = arith.constant 0 : index
    %7 = vector.load %arg2[%c48, %c0_3] : memref<49x1152xbf16, #tpu.memory_space<vmem>>, vector<1x1152xbf16>
    %8 = arith.extf %7 : vector<1x1152xbf16> to vector<1x1152xf32>
    %9 = arith.addf %6, %8 : vector<1x1152xf32>
    %10 = arith.negf %9 : vector<1x1152xf32>
    %11 = math.exp %10 : vector<1x1152xf32>
    %cst_4 = arith.constant 1.000000e+00 : f32
    %12 = vector.broadcast %cst_4 : f32 to vector<1x1152xf32>
    %13 = arith.addf %12, %11 : vector<1x1152xf32>
    %14 = arith.divf %12, %13 : vector<1x1152xf32>
    %c0_5 = arith.constant 0 : index
    %c0_6 = arith.constant 0 : index
    %15 = vector.load %arg4[%c0_5, %c0_6] : memref<224x1152xbf16, #tpu.memory_space<vmem>>, vector<224x1152xbf16>
    %16 = arith.extf %15 : vector<224x1152xbf16> to vector<224x1152xf32>
    %17 = vector.broadcast %14 : vector<1x1152xf32> to vector<224x1152xf32>
    %18 = arith.mulf %16, %17 : vector<224x1152xf32>
    %c0_7 = arith.constant 0 : index
    %c0_8 = arith.constant 0 : index
    %19 = vector.load %arg3[%c0_7, %c0_8] : memref<1152x196xf32, #tpu.memory_space<vmem>>, vector<1152x196xf32>
    %cst_9 = arith.constant dense<0.000000e+00> : vector<224x196xf32>
    %20 = tpu.matmul %18, %19, %cst_9 {dimension_numbers = #tpu.dot_dimension_numbers<[1], [0], [0], [1], [0, 0, 1, 1], [], []>} : vector<224x1152xf32>, vector<1152x196xf32>, vector<224x196xf32> -> vector<224x196xf32>
    %21 = arith.truncf %20 : vector<224x196xf32> to vector<224x196xbf16>
    %c0_10 = arith.constant 0 : index
    %c0_11 = arith.constant 0 : index
    %22 = vector.load %arg5[%c0_10, %c0_11] : memref<224x196xbf16, #tpu.memory_space<vmem>>, vector<224x196xbf16>
    tpu.vector_store %arg5[%c0_10, %c0_11], %21 {strides = array<i32>} : memref<224x196xbf16, #tpu.memory_space<vmem>>, vector<224x196xbf16>,
    return
  }
  func.func @transform_0(%arg0: i32) -> (i32, i32) {
    %c0_i32 = arith.constant 0 : i32
    %c0_i32_0 = arith.constant 0 : i32
    %c0_i32_1 = arith.constant 0 : i32
    return %c0_i32, %c0_i32_0 : i32, i32
  }
  func.func @transform_1(%arg0: i32) -> (i32, i32) {
    %c0_i32 = arith.constant 0 : i32
    %c0_i32_0 = arith.constant 0 : i32
    %c0_i32_1 = arith.constant 0 : i32
    return %c0_i32, %c0_i32_0 : i32, i32
  }
  func.func @transform_2(%arg0: i32) -> (i32, i32) {
    %c0_i32 = arith.constant 0 : i32
    %c0_i32_0 = arith.constant 0 : i32
    %c0_i32_1 = arith.constant 0 : i32
    return %c0_i32, %c0_i32_0 : i32, i32
  }
  func.func @transform_3(%arg0: i32) -> (i32, i32) {
    %c0_i32 = arith.constant 0 : i32
    %c0_i32_0 = arith.constant 0 : i32
    %c0_i32_1 = arith.constant 0 : i32
    return %c0_i32, %c0_i32_0 : i32, i32
  }
  func.func @transform_4(%arg0: i32) -> (i32, i32) {
    %c0_i32 = arith.constant 0 : i32
    %c0_i32_0 = arith.constant 0 : i32
    %c0_i32_1 = arith.constant 0 : i32
    return %c0_i32, %c0_i32_0 : i32, i32
  }
}

</mosaic_0001>

<llo_original>
// kernel: se_block.1
$region0: #{se_block.1}
  #allocation0 [shape = 'u32[]', space=smem, size = 0x4, offset = 0x4, fixed_abs, tag = 'smem constant byte address 0x4 - core index']
  #allocation1 [shape = 'u32[144,128]{1,0:T(1,128)}', space=vmem, size = 0x12000, scoped, tag = 'internal scratch']
  %s0 = inlined_call_operand.vmem [shape: f32[48,1], index: 0, kind: input, shape index: {}]
  %s1 = inlined_call_operand.vmem [shape: bf16[49,1152], index: 1, kind: input, shape index: {}]
  %s2 = inlined_call_operand.vmem [shape: f32[1152,196], index: 2, kind: input, shape index: {}]
  %s3 = inlined_call_operand.vmem [shape: bf16[224,1152], index: 3, kind: input, shape index: {}]
  %s4 = inlined_call_operand.vmem [shape: bf16[224,196], index: 4, kind: output, shape index: {}]
  %s5 = sld [smem:[#allocation0]]
  $region26: #{se_block.1} parent=0
    _
  %s7 = ssub.s32 1, %s5
  %s8 = scalar_select 0, %s7, %s5
  // Predicated region
  $region2: #{se_block.1} parent=0 // pred_check
    _
  $region3: #{se_block.1} parent=0 // pred_check_branch
    %10 = sbr.rel (0) target = $region5
  $region4: #{se_block.1} parent=0 // pred_region
    _
  $region5: #{se_block.1} parent=0 // pred_fallthru
    _
  // Predicated region
  $region6: #{se_block.1} parent=0 // pred_check
    _
  $region7: #{se_block.1} parent=0 // pred_check_branch
    %12 = sbr.rel (0) target = $region9
  $region8: #{se_block.1} parent=0 // pred_region
    _
  $region9: #{se_block.1} parent=0 // pred_fallthru
    _
  // Predicated region
  $region10: #{se_block.1} parent=0 // pred_check
    _
  $region11: #{se_block.1} parent=0 // pred_check_branch
    %14 = sbr.rel (0) target = $region13
  $region12: #{se_block.1} parent=0 // pred_region
    _
  $region13: #{se_block.1} parent=0 // pred_fallthru
    _
  // Predicated region
  $region14: #{se_block.1} parent=0 // pred_check
    _
  $region15: #{se_block.1} parent=0 // pred_check_branch
    %16 = sbr.rel (0) target = $region17
  $region16: #{se_block.1} parent=0 // pred_region
    _
  $region17: #{se_block.1} parent=0 // pred_fallthru
    _
  %v17 = vld [vmem:[%s1] sm:$0xff]
  %v18 = vld [vmem:[%s1 + $0x8] sm:$0xff]
  %v19 = vld [vmem:[%s1 + $0x10] sm:$0xff]
  %v20 = vld [vmem:[%s1 + $0x18] sm:$0xff]
  %v21 = vld [vmem:[%s1 + $0x20] sm:$0xf]
  %v22 = vld [vmem:[%s1 + $0x24] sm:$0xff]
  %v23 = vld [vmem:[%s1 + $0x2c] sm:$0xff]
  %v24 = vld [vmem:[%s1 + $0x34] sm:$0xff]
  %v25 = vld [vmem:[%s1 + $0x3c] sm:$0xff]
  %v26 = vld [vmem:[%s1 + $0x44] sm:$0xf]
  %v27 = vld [vmem:[%s1 + $0x48] sm:$0xff]
  %v28 = vld [vmem:[%s1 + $0x50] sm:$0xff]
  %v29 = vld [vmem:[%s1 + $0x58] sm:$0xff]
  %v30 = vld [vmem:[%s1 + $0x60] sm:$0xff]
  %v31 = vld [vmem:[%s1 + $0x68] sm:$0xf]
  %v32 = vld [vmem:[%s1 + $0x6c] sm:$0xff]
  %v33 = vld [vmem:[%s1 + $0x74] sm:$0xff]
  %v34 = vld [vmem:[%s1 + $0x7c] sm:$0xff]
  %v35 = vld [vmem:[%s1 + $0x84] sm:$0xff]
  %v36 = vld [vmem:[%s1 + $0x8c] sm:$0xf]
  %v37 = vld [vmem:[%s1 + $0x90] sm:$0xff]
  %v38 = vld [vmem:[%s1 + $0x98] sm:$0xff]
  %v39 = vld [vmem:[%s1 + $0xa0] sm:$0xff]
  %v40 = vld [vmem:[%s1 + $0xa8] sm:$0xff]
  %v41 = vld [vmem:[%s1 + $0xb0] sm:$0xf]
  %v42 = vld [vmem:[%s1 + $0xb4] sm:$0xff]
  %v43 = vld [vmem:[%s1 + $0xbc] sm:$0xff]
  %v44 = vld [vmem:[%s1 + $0xc4] sm:$0xff]
  %v45 = vld [vmem:[%s1 + $0xcc] sm:$0xff]
  %v46 = vld [vmem:[%s1 + $0xd4] sm:$0xf]
  %v47 = vld [vmem:[%s0] sm:$0xff]
  %v48 = vld [vmem:[%s0 + $0x8] sm:$0xff]
  %v49 = vld [vmem:[%s0 + $0x10] sm:$0xff]
  %v50 = vld [vmem:[%s0 + $0x18] sm:$0xff]
  %v51 = vld [vmem:[%s0 + $0x20] sm:$0xff]
  %v52 = vld [vmem:[%s0 + $0x28] sm:$0xff]
  %v53 = vunpack.c.l.bf16 %v17
  %v54 = vunpack.c.h.bf16 %v17
  %v55 = vunpack.c.l.bf16 %v18
  %v56 = vunpack.c.h.bf16 %v18
  %v57 = vunpack.c.l.bf16 %v19
  %v58 = vunpack.c.h.bf16 %v19
  %v59 = vunpack.c.l.bf16 %v20
  %v60 = vunpack.c.h.bf16 %v20
  %v61 = vunpack.c.l.bf16 %v21
  %v62 = vunpack.c.l.bf16 %v22
  %v63 = vunpack.c.h.bf16 %v22
  %v64 = vunpack.c.l.bf16 %v23
  %v65 = vunpack.c.h.bf16 %v23
  %v66 = vunpack.c.l.bf16 %v24
  %v67 = vunpack.c.h.bf16 %v24
  %v68 = vunpack.c.l.bf16 %v25
  %v69 = vunpack.c.h.bf16 %v25
  %v70 = vunpack.c.l.bf16 %v26
  %v71 = vunpack.c.l.bf16 %v27
  %v72 = vunpack.c.h.bf16 %v27
  %v73 = vunpack.c.l.bf16 %v28
  %v74 = vunpack.c.h.bf16 %v28
  %v75 = vunpack.c.l.bf16 %v29
  %v76 = vunpack.c.h.bf16 %v29
  %v77 = vunpack.c.l.bf16 %v30
  %v78 = vunpack.c.h.bf16 %v30
  %v79 = vunpack.c.l.bf16 %v31
  %v80 = vunpack.c.l.bf16 %v32
  %v81 = vunpack.c.h.bf16 %v32
  %v82 = vunpack.c.l.bf16 %v33
  %v83 = vunpack.c.h.bf16 %v33
  %v84 = vunpack.c.l.bf16 %v34
  %v85 = vunpack.c.h.bf16 %v34
  %v86 = vunpack.c.l.bf16 %v35
  %v87 = vunpack.c.h.bf16 %v35
  %v88 = vunpack.c.l.bf16 %v36
  %v89 = vunpack.c.l.bf16 %v37
  %v90 = vunpack.c.h.bf16 %v37
  %v91 = vunpack.c.l.bf16 %v38
  %v92 = vunpack.c.h.bf16 %v38
  %v93 = vunpack.c.l.bf16 %v39
  %v94 = vunpack.c.h.bf16 %v39
  %v95 = vunpack.c.l.bf16 %v40
  %v96 = vunpack.c.h.bf16 %v40
  %v97 = vunpack.c.l.bf16 %v41
  %v98 = vunpack.c.l.bf16 %v42
  %v99 = vunpack.c.h.bf16 %v42
  %v100 = vunpack.c.l.bf16 %v43
  %v101 = vunpack.c.h.bf16 %v43
  %v102 = vunpack.c.l.bf16 %v44
  %v103 = vunpack.c.h.bf16 %v44
  %v104 = vunpack.c.l.bf16 %v45
  %v105 = vunpack.c.h.bf16 %v45
  %v106 = vunpack.c.l.bf16 %v46
  %108 = vset.pattern.permute.xlu0 0
  %109 = vperm.xlu0 %108, %v47
  %v110 = vpop.permute.xlu0 %109
  %113 = vset.pattern.permute.xlu0 0
  %114 = vperm.xlu0 %113, %v48
  %v115 = vpop.permute.xlu0 %114
  %118 = vset.pattern.permute.xlu0 0
  %119 = vperm.xlu0 %118, %v49
  %v120 = vpop.permute.xlu0 %119
  %123 = vset.pattern.permute.xlu0 0
  %124 = vperm.xlu0 %123, %v50
  %v125 = vpop.permute.xlu0 %124
  %128 = vset.pattern.permute.xlu0 0
  %129 = vperm.xlu0 %128, %v51
  %v130 = vpop.permute.xlu0 %129
  %133 = vset.pattern.permute.xlu0 0
  %134 = vperm.xlu0 %133, %v52
  %v135 = vpop.permute.xlu0 %134
  %v137 = vmul.f32 %v53, %v110
  %v138 = vmul.f32 %v54, %v110
  %v139 = vmul.f32 %v55, %v110
  %v140 = vmul.f32 %v56, %v110
  %v141 = vmul.f32 %v57, %v110
  %v142 = vmul.f32 %v58, %v110
  %v143 = vmul.f32 %v59, %v110
  %v144 = vmul.f32 %v60, %v110
  %v145 = vmul.f32 %v61, %v110
  %v146 = vmul.f32 %v62, %v115
  %v147 = vmul.f32 %v63, %v115
  %v148 = vmul.f32 %v64, %v115
  %v149 = vmul.f32 %v65, %v115
  %v150 = vmul.f32 %v66, %v115
  %v151 = vmul.f32 %v67, %v115
  %v152 = vmul.f32 %v68, %v115
  %v153 = vmul.f32 %v69, %v115
  %v154 = vmul.f32 %v70, %v115
  %v155 = vmul.f32 %v71, %v120
  %v156 = vmul.f32 %v72, %v120
  %v157 = vmul.f32 %v73, %v120
  %v158 = vmul.f32 %v74, %v120
  %v159 = vmul.f32 %v75, %v120
  %v160 = vmul.f32 %v76, %v120
  %v161 = vmul.f32 %v77, %v120
  %v162 = vmul.f32 %v78, %v120
  %v163 = vmul.f32 %v79, %v120
  %v164 = vmul.f32 %v80, %v125
  %v165 = vmul.f32 %v81, %v125
  %v166 = vmul.f32 %v82, %v125
  %v167 = vmul.f32 %v83, %v125
  %v168 = vmul.f32 %v84, %v125
  %v169 = vmul.f32 %v85, %v125
  %v170 = vmul.f32 %v86, %v125
  %v171 = vmul.f32 %v87, %v125
  %v172 = vmul.f32 %v88, %v125
  %v173 = vmul.f32 %v89, %v130
  %v174 = vmul.f32 %v90, %v130
  %v175 = vmul.f32 %v91, %v130
  %v176 = vmul.f32 %v92, %v130
  %v177 = vmul.f32 %v93, %v130
  %v178 = vmul.f32 %v94, %v130
  %v179 = vmul.f32 %v95, %v130
  %v180 = vmul.f32 %v96, %v130
  %v181 = vmul.f32 %v97, %v130
  %v182 = vmul.f32 %v98, %v135
  %v183 = vmul.f32 %v99, %v135
  %v184 = vmul.f32 %v100, %v135
  %v185 = vmul.f32 %v101, %v135
  %v186 = vmul.f32 %v102, %v135
  %v187 = vmul.f32 %v103, %v135
  %v188 = vmul.f32 %v104, %v135
  %v189 = vmul.f32 %v105, %v135
  %v190 = vmul.f32 %v106, %v135
  %v191 = vadd.f32 %v137, %v146
  %v192 = vadd.f32 %v191, %v155
  %v193 = vadd.f32 %v192, %v164
  %v194 = vadd.f32 %v193, %v173
  %v195 = vadd.f32 %v194, %v182
  %v196 = vrot.slane %v195, 4
  %v197 = vadd.f32 %v195, %v196
  %v198 = vrot.slane %v197, 2
  %v199 = vadd.f32 %v197, %v198
  %v200 = vrot.slane %v199, 1
  %v201 = vadd.f32 %v199, %v200
  %v202 = vadd.f32 %v138, %v147
  %v203 = vadd.f32 %v202, %v156
  %v204 = vadd.f32 %v203, %v165
  %v205 = vadd.f32 %v204, %v174
  %v206 = vadd.f32 %v205, %v183
  %v207 = vrot.slane %v206, 4
  %v208 = vadd.f32 %v206, %v207
  %v209 = vrot.slane %v208, 2
  %v210 = vadd.f32 %v208, %v209
  %v211 = vrot.slane %v210, 1
  %v212 = vadd.f32 %v210, %v211
  %v213 = vadd.f32 %v139, %v148
  %v214 = vadd.f32 %v213, %v157
  %v215 = vadd.f32 %v214, %v166
  %v216 = vadd.f32 %v215, %v175
  %v217 = vadd.f32 %v216, %v184
  %v218 = vrot.slane %v217, 4
  %v219 = vadd.f32 %v217, %v218
  %v220 = vrot.slane %v219, 2
  %v221 = vadd.f32 %v219, %v220
  %v222 = vrot.slane %v221, 1
  %v223 = vadd.f32 %v221, %v222
  %v224 = vadd.f32 %v140, %v149
  %v225 = vadd.f32 %v224, %v158
  %v226 = vadd.f32 %v225, %v167
  %v227 = vadd.f32 %v226, %v176
  %v228 = vadd.f32 %v227, %v185
  %v229 = vrot.slane %v228, 4
  %v230 = vadd.f32 %v228, %v229
  %v231 = vrot.slane %v230, 2
  %v232 = vadd.f32 %v230, %v231
  %v233 = vrot.slane %v232, 1
  %v234 = vadd.f32 %v232, %v233
  %v235 = vadd.f32 %v141, %v150
  %v236 = vadd.f32 %v235, %v159
  %v237 = vadd.f32 %v236, %v168
  %v238 = vadd.f32 %v237, %v177
  %v239 = vadd.f32 %v238, %v186
  %v240 = vrot.slane %v239, 4
  %v241 = vadd.f32 %v239, %v240
  %v242 = vrot.slane %v241, 2
  %v243 = vadd.f32 %v241, %v242
  %v244 = vrot.slane %v243, 1
  %v245 = vadd.f32 %v243, %v244
  %v246 = vadd.f32 %v142, %v151
  %v247 = vadd.f32 %v246, %v160
  %v248 = vadd.f32 %v247, %v169
  %v249 = vadd.f32 %v248, %v178
  %v250 = vadd.f32 %v249, %v187
  %v251 = vrot.slane %v250, 4
  %v252 = vadd.f32 %v250, %v251
  %v253 = vrot.slane %v252, 2
  %v254 = vadd.f32 %v252, %v253
  %v255 = vrot.slane %v254, 1
  %v256 = vadd.f32 %v254, %v255
  %v257 = vadd.f32 %v143, %v152
  %v258 = vadd.f32 %v257, %v161
  %v259 = vadd.f32 %v258, %v170
  %v260 = vadd.f32 %v259, %v179
  %v261 = vadd.f32 %v260, %v188
  %v262 = vrot.slane %v261, 4
  %v263 = vadd.f32 %v261, %v262
  %v264 = vrot.slane %v263, 2
  %v265 = vadd.f32 %v263, %v264
  %v266 = vrot.slane %v265, 1
  %v267 = vadd.f32 %v265, %v266
  %v268 = vadd.f32 %v144, %v153
  %v269 = vadd.f32 %v268, %v162
  %v270 = vadd.f32 %v269, %v171
  %v271 = vadd.f32 %v270, %v180
  %v272 = vadd.f32 %v271, %v189
  %v273 = vrot.slane %v272, 4
  %v274 = vadd.f32 %v272, %v273
  %v275 = vrot.slane %v274, 2
  %v276 = vadd.f32 %v274, %v275
  %v277 = vrot.slane %v276, 1
  %v278 = vadd.f32 %v276, %v277
  %v279 = vadd.f32 %v145, %v154
  %v280 = vadd.f32 %v279, %v163
  %v281 = vadd.f32 %v280, %v172
  %v282 = vadd.f32 %v281, %v181
  %v283 = vadd.f32 %v282, %v190
  %v284 = vrot.slane %v283, 4
  %v285 = vadd.f32 %v283, %v284
  %v286 = vrot.slane %v285, 2
  %v287 = vadd.f32 %v285, %v286
  %v288 = vrot.slane %v287, 1
  %v289 = vadd.f32 %v287, %v288
  %v290 = vld [vmem:[%s1 + $0xd8] sm:$0x11]
  %v291 = vld [vmem:[%s1 + $0xe0] sm:$0x11]
  %v292 = vld [vmem:[%s1 + $0xe8] sm:$0x11]
  %v293 = vld [vmem:[%s1 + $0xf0] sm:$0x11]
  %v294 = vld [vmem:[%s1 + $0xf8] sm:$0x1]
  %v295 = vunpack.c.l.bf16 %v290
  %v296 = vunpack.c.h.bf16 %v290
  %v297 = vunpack.c.l.bf16 %v291
  %v298 = vunpack.c.h.bf16 %v291
  %v299 = vunpack.c.l.bf16 %v292
  %v300 = vunpack.c.h.bf16 %v292
  %v301 = vunpack.c.l.bf16 %v293
  %v302 = vunpack.c.h.bf16 %v293
  %v303 = vunpack.c.l.bf16 %v294
  %v304 = vadd.f32 %v201, %v295
  %v305 = vadd.f32 %v212, %v296
  %v306 = vadd.f32 %v223, %v297
  %v307 = vadd.f32 %v234, %v298
  %v308 = vadd.f32 %v245, %v299
  %v309 = vadd.f32 %v256, %v300
  %v310 = vadd.f32 %v267, %v301
  %v311 = vadd.f32 %v278, %v302
  %v312 = vadd.f32 %v289, %v303
  %v313 = vxor.u32 %v304, 2147483648
  %v314 = vxor.u32 %v305, 2147483648
  %v315 = vxor.u32 %v306, 2147483648
  %v316 = vxor.u32 %v307, 2147483648
  %v317 = vxor.u32 %v308, 2147483648
  %v318 = vxor.u32 %v309, 2147483648
  %v319 = vxor.u32 %v310, 2147483648
  %v320 = vxor.u32 %v311, 2147483648
  %v321 = vxor.u32 %v312, 2147483648
  %v322 = vmul.f32 %v313, 1.442695
  %v323 = vpow.pop %v322
  %v324 = vmul.f32 %v314, 1.442695
  %v325 = vpow.pop %v324
  %v326 = vmul.f32 %v315, 1.442695
  %v327 = vpow.pop %v326
  %v328 = vmul.f32 %v316, 1.442695
  %v329 = vpow.pop %v328
  %v330 = vmul.f32 %v317, 1.442695
  %v331 = vpow.pop %v330
  %v332 = vmul.f32 %v318, 1.442695
  %v333 = vpow.pop %v332
  %v334 = vmul.f32 %v319, 1.442695
  %v335 = vpow.pop %v334
  %v336 = vmul.f32 %v320, 1.442695
  %v337 = vpow.pop %v336
  %v338 = vmul.f32 %v321, 1.442695
  %v339 = vpow.pop %v338
  %v340 = vadd.f32 %v323, 1.0
  %v341 = vadd.f32 %v325, 1.0
  %v342 = vadd.f32 %v327, 1.0
  %v343 = vadd.f32 %v329, 1.0
  %v344 = vadd.f32 %v331, 1.0
  %v345 = vadd.f32 %v333, 1.0
  %v346 = vadd.f32 %v335, 1.0
  %v347 = vadd.f32 %v337, 1.0
  %v348 = vadd.f32 %v339, 1.0
  %v349 = vrcp.pop %v340
  %v350 = vmul.f32 1.0, %v349
  %v351 = vrcp.pop %v341
  %v352 = vmul.f32 1.0, %v351
  %v353 = vrcp.pop %v342
  %v354 = vmul.f32 1.0, %v353
  %v355 = vrcp.pop %v343
  %v356 = vmul.f32 1.0, %v355
  %v357 = vrcp.pop %v344
  %v358 = vmul.f32 1.0, %v357
  %v359 = vrcp.pop %v345
  %v360 = vmul.f32 1.0, %v359
  %v361 = vrcp.pop %v346
  %v362 = vmul.f32 1.0, %v361
  %v363 = vrcp.pop %v347
  %v364 = vmul.f32 1.0, %v363
  %v365 = vrcp.pop %v348
  %v366 = vmul.f32 1.0, %v365
  %v367 = vld [vmem:[%s3] sm:$0xff]
  %v368 = vld [vmem:[%s3 + $0x8] sm:$0xff]
  %v369 = vld [vmem:[%s3 + $0x10] sm:$0xff]
  %v370 = vld [vmem:[%s3 + $0x18] sm:$0xff]
  %v371 = vld [vmem:[%s3 + $0x20] sm:$0xf]
  %v372 = vld [vmem:[%s3 + $0x24] sm:$0xff]
  %v373 = vld [vmem:[%s3 + $0x2c] sm:$0xff]
  %v374 = vld [vmem:[%s3 + $0x34] sm:$0xff]
  %v375 = vld [vmem:[%s3 + $0x3c] sm:$0xff]
  %v376 = vld [vmem:[%s3 + $0x44] sm:$0xf]
  %v377 = vld [vmem:[%s3 + $0x48] sm:$0xff]
  %v378 = vld [vmem:[%s3 + $0x50] sm:$0xff]
  %v379 = vld [vmem:[%s3 + $0x58] sm:$0xff]
  %v380 = vld [vmem:[%s3 + $0x60] sm:$0xff]
  %v381 = vld [vmem:[%s3 + $0x68] sm:$0xf]
  %v382 = vld [vmem:[%s3 + $0x6c] sm:$0xff]
  %v383 = vld [vmem:[%s3 + $0x74] sm:$0xff]
  %v384 = vld [vmem:[%s3 + $0x7c] sm:$0xff]
  %v385 = vld [vmem:[%s3 + $0x84] sm:$0xff]
  %v386 = vld [vmem:[%s3 + $0x8c] sm:$0xf]
  %v387 = vld [vmem:[%s3 + $0x90] sm:$0xff]
  %v388 = vld [vmem:[%s3 + $0x98] sm:$0xff]
  %v389 = vld [vmem:[%s3 + $0xa0] sm:$0xff]
  %v390 = vld [vmem:[%s3 + $0xa8] sm:$0xff]
  %v391 = vld [vmem:[%s3 + $0xb0] sm:$0xf]
  %v392 = vld [vmem:[%s3 + $0xb4] sm:$0xff]
  %v393 = vld [vmem:[%s3 + $0xbc] sm:$0xff]
  %v394 = vld [vmem:[%s3 + $0xc4] sm:$0xff]
  %v395 = vld [vmem:[%s3 + $0xcc] sm:$0xff]
  %v396 = vld [vmem:[%s3 + $0xd4] sm:$0xf]
  %v397 = vld [vmem:[%s3 + $0xd8] sm:$0xff]
  %v398 = vld [vmem:[%s3 + $0xe0] sm:$0xff]
  %v399 = vld [vmem:[%s3 + $0xe8] sm:$0xff]
  %v400 = vld [vmem:[%s3 + $0xf0] sm:$0xff]
  %v401 = vld [vmem:[%s3 + $0xf8] sm:$0xf]
  %v402 = vld [vmem:[%s3 + $0xfc] sm:$0xff]
  %v403 = vld [vmem:[%s3 + $0x104] sm:$0xff]
  %v404 = vld [vmem:[%s3 + $0x10c] sm:$0xff]
  %v405 = vld [vmem:[%s3 + $0x114] sm:$0xff]
  %v406 = vld [vmem:[%s3 + $0x11c] sm:$0xf]
  %v407 = vld [vmem:[%s3 + $0x120] sm:$0xff]
  %v408 = vld [vmem:[%s3 + $0x128] sm:$0xff]
  %v409 = vld [vmem:[%s3 + $0x130] sm:$0xff]
  %v410 = vld [vmem:[%s3 + $0x138] sm:$0xff]
  %v411 = vld [vmem:[%s3 + $0x140] sm:$0xf]
  %v412 = vld [vmem:[%s3 + $0x144] sm:$0xff]
  %v413 = vld [vmem:[%s3 + $0x14c] sm:$0xff]
  %v414 = vld [vmem:[%s3 + $0x154] sm:$0xff]
  %v415 = vld [vmem:[%s3 + $0x15c] sm:$0xff]
  %v416 = vld [vmem:[%s3 + $0x164] sm:$0xf]
  %v417 = vld [vmem:[%s3 + $0x168] sm:$0xff]
  %v418 = vld [vmem:[%s3 + $0x170] sm:$0xff]
  %v419 = vld [vmem:[%s3 + $0x178] sm:$0xff]
  %v420 = vld [vmem:[%s3 + $0x180] sm:$0xff]
  %v421 = vld [vmem:[%s3 + $0x188] sm:$0xf]
  %v422 = vld [vmem:[%s3 + $0x18c] sm:$0xff]
  %v423 = vld [vmem:[%s3 + $0x194] sm:$0xff]
  %v424 = vld [vmem:[%s3 + $0x19c] sm:$0xff]
  %v425 = vld [vmem:[%s3 + $0x1a4] sm:$0xff]
  %v426 = vld [vmem:[%s3 + $0x1ac] sm:$0xf]
  %v427 = vld [vmem:[%s3 + $0x1b0] sm:$0xff]
  %v428 = vld [vmem:[%s3 + $0x1b8] sm:$0xff]
  %v429 = vld [vmem:[%s3 + $0x1c0] sm:$0xff]
  %v430 = vld [vmem:[%s3 + $0x1c8] sm:$0xff]
  %v431 = vld [vmem:[%s3 + $0x1d0] sm:$0xf]
  %v432 = vld [vmem:[%s3 + $0x1d4] sm:$0xff]
  %v433 = vld [vmem:[%s3 + $0x1dc] sm:$0xff]
  %v434 = vld [vmem:[%s3 + $0x1e4] sm:$0xff]
  %v435 = vld [vmem:[%s3 + $0x1ec] sm:$0xff]
  %v436 = vld [vmem:[%s3 + $0x1f4] sm:$0xf]
  %v437 = vld [vmem:[%s3 + $0x1f8] sm:$0xff]
  %v438 = vld [vmem:[%s3 + $0x200] sm:$0xff]
  %v439 = vld [vmem:[%s3 + $0x208] sm:$0xff]
  %v440 = vld [vmem:[%s3 + $0x210] sm:$0xff]
  %v441 = vld [vmem:[%s3 + $0x218] sm:$0xf]
  %v442 = vld [vmem:[%s3 + $0x21c] sm:$0xff]
  %v443 = vld [vmem:[%s3 + $0x224] sm:$0xff]
  %v444 = vld [vmem:[%s3 + $0x22c] sm:$0xff]
  %v445 = vld [vmem:[%s3 + $0x234] sm:$0xff]
  %v446 = vld [vmem:[%s3 + $0x23c] sm:$0xf]
  %v447 = vld [vmem:[%s3 + $0x240] sm:$0xff]
  %v448 = vld [vmem:[%s3 + $0x248] sm:$0xff]
  %v449 = vld [vmem:[%s3 + $0x250] sm:$0xff]
  %v450 = vld [vmem:[%s3 + $0x258] sm:$0xff]
  %v451 = vld [vmem:[%s3 + $0x260] sm:$0xf]
  %v452 = vld [vmem:[%s3 + $0x264] sm:$0xff]
  %v453 = vld [vmem:[%s3 + $0x26c] sm:$0xff]
  %v454 = vld [vmem:[%s3 + $0x274] sm:$0xff]
  %v455 = vld [vmem:[%s3 + $0x27c] sm:$0xff]
  %v456 = vld [vmem:[%s3 + $0x284] sm:$0xf]
  %v457 = vld [vmem:[%s3 + $0x288] sm:$0xff]
  %v458 = vld [vmem:[%s3 + $0x290] sm:$0xff]
  %v459 = vld [vmem:[%s3 + $0x298] sm:$0xff]
  %v460 = vld [vmem:[%s3 + $0x2a0] sm:$0xff]
  %v461 = vld [vmem:[%s3 + $0x2a8] sm:$0xf]
  %v462 = vld [vmem:[%s3 + $0x2ac] sm:$0xff]
  %v463 = vld [vmem:[%s3 + $0x2b4] sm:$0xff]
  %v464 = vld [vmem:[%s3 + $0x2bc] sm:$0xff]
  %v465 = vld [vmem:[%s3 + $0x2c4] sm:$0xff]
  %v466 = vld [vmem:[%s3 + $0x2cc] sm:$0xf]
  %v467 = vld [vmem:[%s3 + $0x2d0] sm:$0xff]
  %v468 = vld [vmem:[%s3 + $0x2d8] sm:$0xff]
  %v469 = vld [vmem:[%s3 + $0x2e0] sm:$0xff]
  %v470 = vld [vmem:[%s3 + $0x2e8] sm:$0xff]
  %v471 = vld [vmem:[%s3 + $0x2f0] sm:$0xf]
  %v472 = vld [vmem:[%s3 + $0x2f4] sm:$0xff]
  %v473 = vld [vmem:[%s3 + $0x2fc] sm:$0xff]
  %v474 = vld [vmem:[%s3 + $0x304] sm:$0xff]
  %v475 = vld [vmem:[%s3 + $0x30c] sm:$0xff]
  %v476 = vld [vmem:[%s3 + $0x314] sm:$0xf]
  %v477 = vld [vmem:[%s3 + $0x318] sm:$0xff]
  %v478 = vld [vmem:[%s3 + $0x320] sm:$0xff]
  %v479 = vld [vmem:[%s3 + $0x328] sm:$0xff]
  %v480 = vld [vmem:[%s3 + $0x330] sm:$0xff]
  %v481 = vld [vmem:[%s3 + $0x338] sm:$0xf]
  %v482 = vld [vmem:[%s3 + $0x33c] sm:$0xff]
  %v483 = vld [vmem:[%s3 + $0x344] sm:$0xff]
  %v484 = vld [vmem:[%s3 + $0x34c] sm:$0xff]
  %v485 = vld [vmem:[%s3 + $0x354] sm:$0xff]
  %v486 = vld [vmem:[%s3 + $0x35c] sm:$0xf]
  %v487 = vld [vmem:[%s3 + $0x360] sm:$0xff]
  %v488 = vld [vmem:[%s3 + $0x368] sm:$0xff]
  %v489 = vld [vmem:[%s3 + $0x370] sm:$0xff]
  %v490 = vld [vmem:[%s3 + $0x378] sm:$0xff]
  %v491 = vld [vmem:[%s3 + $0x380] sm:$0xf]
  %v492 = vld [vmem:[%s3 + $0x384] sm:$0xff]
  %v493 = vld [vmem:[%s3 + $0x38c] sm:$0xff]
  %v494 = vld [vmem:[%s3 + $0x394] sm:$0xff]
  %v495 = vld [vmem:[%s3 + $0x39c] sm:$0xff]
  %v496 = vld [vmem:[%s3 + $0x3a4] sm:$0xf]
  %v497 = vld [vmem:[%s3 + $0x3a8] sm:$0xff]
  %v498 = vld [vmem:[%s3 + $0x3b0] sm:$0xff]
  %v499 = vld [vmem:[%s3 + $0x3b8] sm:$0xff]
  %v500 = vld [vmem:[%s3 + $0x3c0] sm:$0xff]
  %v501 = vld [vmem:[%s3 + $0x3c8] sm:$0xf]
  %v502 = vld [vmem:[%s3 + $0x3cc] sm:$0xff]
  %v503 = vld [vmem:[%s3 + $0x3d4] sm:$0xff]
  %v504 = vld [vmem:[%s3 + $0x3dc] sm:$0xff]
  %v505 = vld [vmem:[%s3 + $0x3e4] sm:$0xff]
  %v506 = vld [vmem:[%s3 + $0x3ec] sm:$0xf]
  %v507 = vunpack.c.l.bf16 %v367
  %v508 = vunpack.c.h.bf16 %v367
  %v509 = vunpack.c.l.bf16 %v368
  %v510 = vunpack.c.h.bf16 %v368
  %v511 = vunpack.c.l.bf16 %v369
  %v512 = vunpack.c.h.bf16 %v369
  %v513 = vunpack.c.l.bf16 %v370
  %v514 = vunpack.c.h.bf16 %v370
  %v515 = vunpack.c.l.bf16 %v371
  %v516 = vunpack.c.l.bf16 %v372
  %v517 = vunpack.c.h.bf16 %v372
  %v518 = vunpack.c.l.bf16 %v373
  %v519 = vunpack.c.h.bf16 %v373
  %v520 = vunpack.c.l.bf16 %v374
  %v521 = vunpack.c.h.bf16 %v374
  %v522 = vunpack.c.l.bf16 %v375
  %v523 = vunpack.c.h.bf16 %v375
  %v524 = vunpack.c.l.bf16 %v376
  %v525 = vunpack.c.l.bf16 %v377
  %v526 = vunpack.c.h.bf16 %v377
  %v527 = vunpack.c.l.bf16 %v378
  %v528 = vunpack.c.h.bf16 %v378
  %v529 = vunpack.c.l.bf16 %v379
  %v530 = vunpack.c.h.bf16 %v379
  %v531 = vunpack.c.l.bf16 %v380
  %v532 = vunpack.c.h.bf16 %v380
  %v533 = vunpack.c.l.bf16 %v381
  %v534 = vunpack.c.l.bf16 %v382
  %v535 = vunpack.c.h.bf16 %v382
  %v536 = vunpack.c.l.bf16 %v383
  %v537 = vunpack.c.h.bf16 %v383
  %v538 = vunpack.c.l.bf16 %v384
  %v539 = vunpack.c.h.bf16 %v384
  %v540 = vunpack.c.l.bf16 %v385
  %v541 = vunpack.c.h.bf16 %v385
  %v542 = vunpack.c.l.bf16 %v386
  %v543 = vunpack.c.l.bf16 %v387
  %v544 = vunpack.c.h.bf16 %v387
  %v545 = vunpack.c.l.bf16 %v388
  %v546 = vunpack.c.h.bf16 %v388
  %v547 = vunpack.c.l.bf16 %v389
  %v548 = vunpack.c.h.bf16 %v389
  %v549 = vunpack.c.l.bf16 %v390
  %v550 = vunpack.c.h.bf16 %v390
  %v551 = vunpack.c.l.bf16 %v391
  %v552 = vunpack.c.l.bf16 %v392
  %v553 = vunpack.c.h.bf16 %v392
  %v554 = vunpack.c.l.bf16 %v393
  %v555 = vunpack.c.h.bf16 %v393
  %v556 = vunpack.c.l.bf16 %v394
  %v557 = vunpack.c.h.bf16 %v394
  %v558 = vunpack.c.l.bf16 %v395
  %v559 = vunpack.c.h.bf16 %v395
  %v560 = vunpack.c.l.bf16 %v396
  %v561 = vunpack.c.l.bf16 %v397
  %v562 = vunpack.c.h.bf16 %v397
  %v563 = vunpack.c.l.bf16 %v398
  %v564 = vunpack.c.h.bf16 %v398
  %v565 = vunpack.c.l.bf16 %v399
  %v566 = vunpack.c.h.bf16 %v399
  %v567 = vunpack.c.l.bf16 %v400
  %v568 = vunpack.c.h.bf16 %v400
  %v569 = vunpack.c.l.bf16 %v401
  %v570 = vunpack.c.l.bf16 %v402
  %v571 = vunpack.c.h.bf16 %v402
  %v572 = vunpack.c.l.bf16 %v403
  %v573 = vunpack.c.h.bf16 %v403
  %v574 = vunpack.c.l.bf16 %v404
  %v575 = vunpack.c.h.bf16 %v404
  %v576 = vunpack.c.l.bf16 %v405
  %v577 = vunpack.c.h.bf16 %v405
  %v578 = vunpack.c.l.bf16 %v406
  %v579 = vunpack.c.l.bf16 %v407
  %v580 = vunpack.c.h.bf16 %v407
  %v581 = vunpack.c.l.bf16 %v408
  %v582 = vunpack.c.h.bf16 %v408
  %v583 = vunpack.c.l.bf16 %v409
  %v584 = vunpack.c.h.bf16 %v409
  %v585 = vunpack.c.l.bf16 %v410
  %v586 = vunpack.c.h.bf16 %v410
  %v587 = vunpack.c.l.bf16 %v411
  %v588 = vunpack.c.l.bf16 %v412
  %v589 = vunpack.c.h.bf16 %v412
  %v590 = vunpack.c.l.bf16 %v413
  %v591 = vunpack.c.h.bf16 %v413
  %v592 = vunpack.c.l.bf16 %v414
  %v593 = vunpack.c.h.bf16 %v414
  %v594 = vunpack.c.l.bf16 %v415
  %v595 = vunpack.c.h.bf16 %v415
  %v596 = vunpack.c.l.bf16 %v416
  %v597 = vunpack.c.l.bf16 %v417
  %v598 = vunpack.c.h.bf16 %v417
  %v599 = vunpack.c.l.bf16 %v418
  %v600 = vunpack.c.h.bf16 %v418
  %v601 = vunpack.c.l.bf16 %v419
  %v602 = vunpack.c.h.bf16 %v419
  %v603 = vunpack.c.l.bf16 %v420
  %v604 = vunpack.c.h.bf16 %v420
  %v605 = vunpack.c.l.bf16 %v421
  %v606 = vunpack.c.l.bf16 %v422
  %v607 = vunpack.c.h.bf16 %v422
  %v608 = vunpack.c.l.bf16 %v423
  %v609 = vunpack.c.h.bf16 %v423
  %v610 = vunpack.c.l.bf16 %v424
  %v611 = vunpack.c.h.bf16 %v424
  %v612 = vunpack.c.l.bf16 %v425
  %v613 = vunpack.c.h.bf16 %v425
  %v614 = vunpack.c.l.bf16 %v426
  %v615 = vunpack.c.l.bf16 %v427
  %v616 = vunpack.c.h.bf16 %v427
  %v617 = vunpack.c.l.bf16 %v428
  %v618 = vunpack.c.h.bf16 %v428
  %v619 = vunpack.c.l.bf16 %v429
  %v620 = vunpack.c.h.bf16 %v429
  %v621 = vunpack.c.l.bf16 %v430
  %v622 = vunpack.c.h.bf16 %v430
  %v623 = vunpack.c.l.bf16 %v431
  %v624 = vunpack.c.l.bf16 %v432
  %v625 = vunpack.c.h.bf16 %v432
  %v626 = vunpack.c.l.bf16 %v433
  %v627 = vunpack.c.h.bf16 %v433
  %v628 = vunpack.c.l.bf16 %v434
  %v629 = vunpack.c.h.bf16 %v434
  %v630 = vunpack.c.l.bf16 %v435
  %v631 = vunpack.c.h.bf16 %v435
  %v632 = vunpack.c.l.bf16 %v436
  %v633 = vunpack.c.l.bf16 %v437
  %v634 = vunpack.c.h.bf16 %v437
  %v635 = vunpack.c.l.bf16 %v438
  %v636 = vunpack.c.h.bf16 %v438
  %v637 = vunpack.c.l.bf16 %v439
  %v638 = vunpack.c.h.bf16 %v439
  %v639 = vunpack.c.l.bf16 %v440
  %v640 = vunpack.c.h.bf16 %v440
  %v641 = vunpack.c.l.bf16 %v441
  %v642 = vunpack.c.l.bf16 %v442
  %v643 = vunpack.c.h.bf16 %v442
  %v644 = vunpack.c.l.bf16 %v443
  %v645 = vunpack.c.h.bf16 %v443
  %v646 = vunpack.c.l.bf16 %v444
  %v647 = vunpack.c.h.bf16 %v444
  %v648 = vunpack.c.l.bf16 %v445
  %v649 = vunpack.c.h.bf16 %v445
  %v650 = vunpack.c.l.bf16 %v446
  %v651 = vunpack.c.l.bf16 %v447
  %v652 = vunpack.c.h.bf16 %v447
  %v653 = vunpack.c.l.bf16 %v448
  %v654 = vunpack.c.h.bf16 %v448
  %v655 = vunpack.c.l.bf16 %v449
  %v656 = vunpack.c.h.bf16 %v449
  %v657 = vunpack.c.l.bf16 %v450
  %v658 = vunpack.c.h.bf16 %v450
  %v659 = vunpack.c.l.bf16 %v451
  %v660 = vunpack.c.l.bf16 %v452
  %v661 = vunpack.c.h.bf16 %v452
  %v662 = vunpack.c.l.bf16 %v453
  %v663 = vunpack.c.h.bf16 %v453
  %v664 = vunpack.c.l.bf16 %v454
  %v665 = vunpack.c.h.bf16 %v454
  %v666 = vunpack.c.l.bf16 %v455
  %v667 = vunpack.c.h.bf16 %v455
  %v668 = vunpack.c.l.bf16 %v456
  %v669 = vunpack.c.l.bf16 %v457
  %v670 = vunpack.c.h.bf16 %v457
  %v671 = vunpack.c.l.bf16 %v458
  %v672 = vunpack.c.h.bf16 %v458
  %v673 = vunpack.c.l.bf16 %v459
  %v674 = vunpack.c.h.bf16 %v459
  %v675 = vunpack.c.l.bf16 %v460
  %v676 = vunpack.c.h.bf16 %v460
  %v677 = vunpack.c.l.bf16 %v461
  %v678 = vunpack.c.l.bf16 %v462
  %v679 = vunpack.c.h.bf16 %v462
  %v680 = vunpack.c.l.bf16 %v463
  %v681 = vunpack.c.h.bf16 %v463
  %v682 = vunpack.c.l.bf16 %v464
  %v683 = vunpack.c.h.bf16 %v464
  %v684 = vunpack.c.l.bf16 %v465
  %v685 = vunpack.c.h.bf16 %v465
  %v686 = vunpack.c.l.bf16 %v466
  %v687 = vunpack.c.l.bf16 %v467
  %v688 = vunpack.c.h.bf16 %v467
  %v689 = vunpack.c.l.bf16 %v468
  %v690 = vunpack.c.h.bf16 %v468
  %v691 = vunpack.c.l.bf16 %v469
  %v692 = vunpack.c.h.bf16 %v469
  %v693 = vunpack.c.l.bf16 %v470
  %v694 = vunpack.c.h.bf16 %v470
  %v695 = vunpack.c.l.bf16 %v471
  %v696 = vunpack.c.l.bf16 %v472
  %v697 = vunpack.c.h.bf16 %v472
  %v698 = vunpack.c.l.bf16 %v473
  %v699 = vunpack.c.h.bf16 %v473
  %v700 = vunpack.c.l.bf16 %v474
  %v701 = vunpack.c.h.bf16 %v474
  %v702 = vunpack.c.l.bf16 %v475
  %v703 = vunpack.c.h.bf16 %v475
  %v704 = vunpack.c.l.bf16 %v476
  %v705 = vunpack.c.l.bf16 %v477
  %v706 = vunpack.c.h.bf16 %v477
  %v707 = vunpack.c.l.bf16 %v478
  %v708 = vunpack.c.h.bf16 %v478
  %v709 = vunpack.c.l.bf16 %v479
  %v710 = vunpack.c.h.bf16 %v479
  %v711 = vunpack.c.l.bf16 %v480
  %v712 = vunpack.c.h.bf16 %v480
  %v713 = vunpack.c.l.bf16 %v481
  %v714 = vunpack.c.l.bf16 %v482
  %v715 = vunpack.c.h.bf16 %v482
  %v716 = vunpack.c.l.bf16 %v483
  %v717 = vunpack.c.h.bf16 %v483
  %v718 = vunpack.c.l.bf16 %v484
  %v719 = vunpack.c.h.bf16 %v484
  %v720 = vunpack.c.l.bf16 %v485
  %v721 = vunpack.c.h.bf16 %v485
  %v722 = vunpack.c.l.bf16 %v486
  %v723 = vunpack.c.l.bf16 %v487
  %v724 = vunpack.c.h.bf16 %v487
  %v725 = vunpack.c.l.bf16 %v488
  %v726 = vunpack.c.h.bf16 %v488
  %v727 = vunpack.c.l.bf16 %v489
  %v728 = vunpack.c.h.bf16 %v489
  %v729 = vunpack.c.l.bf16 %v490
  %v730 = vunpack.c.h.bf16 %v490
  %v731 = vunpack.c.l.bf16 %v491
  %v732 = vunpack.c.l.bf16 %v492
  %v733 = vunpack.c.h.bf16 %v492
  %v734 = vunpack.c.l.bf16 %v493
  %v735 = vunpack.c.h.bf16 %v493
  %v736 = vunpack.c.l.bf16 %v494
  %v737 = vunpack.c.h.bf16 %v494
  %v738 = vunpack.c.l.bf16 %v495
  %v739 = vunpack.c.h.bf16 %v495
  %v740 = vunpack.c.l.bf16 %v496
  %v741 = vunpack.c.l.bf16 %v497
  %v742 = vunpack.c.h.bf16 %v497
  %v743 = vunpack.c.l.bf16 %v498
  %v744 = vunpack.c.h.bf16 %v498
  %v745 = vunpack.c.l.bf16 %v499
  %v746 = vunpack.c.h.bf16 %v499
  %v747 = vunpack.c.l.bf16 %v500
  %v748 = vunpack.c.h.bf16 %v500
  %v749 = vunpack.c.l.bf16 %v501
  %v750 = vunpack.c.l.bf16 %v502
  %v751 = vunpack.c.h.bf16 %v502
  %v752 = vunpack.c.l.bf16 %v503
  %v753 = vunpack.c.h.bf16 %v503
  %v754 = vunpack.c.l.bf16 %v504
  %v755 = vunpack.c.h.bf16 %v504
  %v756 = vunpack.c.l.bf16 %v505
  %v757 = vunpack.c.h.bf16 %v505
  %v758 = vunpack.c.l.bf16 %v506
  %v759 = vlaneseq
  %v760 = vshrl.u32 %v759, 7
  %v761 = vsub.s32 0, %v760
  %v762 = vrot.slane %v350, %v761
  %v763 = vlaneseq
  %v764 = vshrl.u32 %v763, 7
  %v765 = vsub.s32 0, %v764
  %v766 = vrot.slane %v352, %v765
  %v767 = vlaneseq
  %v768 = vshrl.u32 %v767, 7
  %v769 = vsub.s32 0, %v768
  %v770 = vrot.slane %v354, %v769
  %v771 = vlaneseq
  %v772 = vshrl.u32 %v771, 7
  %v773 = vsub.s32 0, %v772
  %v774 = vrot.slane %v356, %v773
  %v775 = vlaneseq
  %v776 = vshrl.u32 %v775, 7
  %v777 = vsub.s32 0, %v776
  %v778 = vrot.slane %v358, %v777
  %v779 = vlaneseq
  %v780 = vshrl.u32 %v779, 7
  %v781 = vsub.s32 0, %v780
  %v782 = vrot.slane %v360, %v781
  %v783 = vlaneseq
  %v784 = vshrl.u32 %v783, 7
  %v785 = vsub.s32 0, %v784
  %v786 = vrot.slane %v362, %v785
  %v787 = vlaneseq
  %v788 = vshrl.u32 %v787, 7
  %v789 = vsub.s32 0, %v788
  %v790 = vrot.slane %v364, %v789
  %v791 = vlaneseq
  %v792 = vshrl.u32 %v791, 7
  %v793 = vsub.s32 0, %v792
  %v794 = vrot.slane %v366, %v793
  %v795 = vmul.f32 %v507, %v762
  %v796 = vmul.f32 %v508, %v766
  %v797 = vmul.f32 %v509, %v770
  %v798 = vmul.f32 %v510, %v774
  %v799 = vmul.f32 %v511, %v778
  %v800 = vmul.f32 %v512, %v782
  %v801 = vmul.f32 %v513, %v786
  %v802 = vmul.f32 %v514, %v790
  %v803 = vmul.f32 %v515, %v794
  %v804 = vmul.f32 %v516, %v762
  %v805 = vmul.f32 %v517, %v766
  %v806 = vmul.f32 %v518, %v770
  %v807 = vmul.f32 %v519, %v774
  %v808 = vmul.f32 %v520, %v778
  %v809 = vmul.f32 %v521, %v782
  %v810 = vmul.f32 %v522, %v786
  %v811 = vmul.f32 %v523, %v790
  %v812 = vmul.f32 %v524, %v794
  %v813 = vmul.f32 %v525, %v762
  %v814 = vmul.f32 %v526, %v766
  %v815 = vmul.f32 %v527, %v770
  %v816 = vmul.f32 %v528, %v774
  %v817 = vmul.f32 %v529, %v778
  %v818 = vmul.f32 %v530, %v782
  %v819 = vmul.f32 %v531, %v786
  %v820 = vmul.f32 %v532, %v790
  %v821 = vmul.f32 %v533, %v794
  %v822 = vmul.f32 %v534, %v762
  %v823 = vmul.f32 %v535, %v766
  %v824 = vmul.f32 %v536, %v770
  %v825 = vmul.f32 %v537, %v774
  %v826 = vmul.f32 %v538, %v778
  %v827 = vmul.f32 %v539, %v782
  %v828 = vmul.f32 %v540, %v786
  %v829 = vmul.f32 %v541, %v790
  %v830 = vmul.f32 %v542, %v794
  %v831 = vmul.f32 %v543, %v762
  %v832 = vmul.f32 %v544, %v766
  %v833 = vmul.f32 %v545, %v770
  %v834 = vmul.f32 %v546, %v774
  %v835 = vmul.f32 %v547, %v778
  %v836 = vmul.f32 %v548, %v782
  %v837 = vmul.f32 %v549, %v786
  %v838 = vmul.f32 %v550, %v790
  %v839 = vmul.f32 %v551, %v794
  %v840 = vmul.f32 %v552, %v762
  %v841 = vmul.f32 %v553, %v766
  %v842 = vmul.f32 %v554, %v770
  %v843 = vmul.f32 %v555, %v774
  %v844 = vmul.f32 %v556, %v778
  %v845 = vmul.f32 %v557, %v782
  %v846 = vmul.f32 %v558, %v786
  %v847 = vmul.f32 %v559, %v790
  %v848 = vmul.f32 %v560, %v794
  %v849 = vmul.f32 %v561, %v762
  %v850 = vmul.f32 %v562, %v766
  %v851 = vmul.f32 %v563, %v770
  %v852 = vmul.f32 %v564, %v774
  %v853 = vmul.f32 %v565, %v778
  %v854 = vmul.f32 %v566, %v782
  %v855 = vmul.f32 %v567, %v786
  %v856 = vmul.f32 %v568, %v790
  %v857 = vmul.f32 %v569, %v794
  %v858 = vmul.f32 %v570, %v762
  %v859 = vmul.f32 %v571, %v766
  %v860 = vmul.f32 %v572, %v770
  %v861 = vmul.f32 %v573, %v774
  %v862 = vmul.f32 %v574, %v778
  %v863 = vmul.f32 %v575, %v782
  %v864 = vmul.f32 %v576, %v786
  %v865 = vmul.f32 %v577, %v790
  %v866 = vmul.f32 %v578, %v794
  %v867 = vmul.f32 %v579, %v762
  %v868 = vmul.f32 %v580, %v766
  %v869 = vmul.f32 %v581, %v770
  %v870 = vmul.f32 %v582, %v774
  %v871 = vmul.f32 %v583, %v778
  %v872 = vmul.f32 %v584, %v782
  %v873 = vmul.f32 %v585, %v786
  %v874 = vmul.f32 %v586, %v790
  %v875 = vmul.f32 %v587, %v794
  %v876 = vmul.f32 %v588, %v762
  %v877 = vmul.f32 %v589, %v766
  %v878 = vmul.f32 %v590, %v770
  %v879 = vmul.f32 %v591, %v774
  %v880 = vmul.f32 %v592, %v778
  %v881 = vmul.f32 %v593, %v782
  %v882 = vmul.f32 %v594, %v786
  %v883 = vmul.f32 %v595, %v790
  %v884 = vmul.f32 %v596, %v794
  %v885 = vmul.f32 %v597, %v762
  %v886 = vmul.f32 %v598, %v766
  %v887 = vmul.f32 %v599, %v770
  %v888 = vmul.f32 %v600, %v774
  %v889 = vmul.f32 %v601, %v778
  %v890 = vmul.f32 %v602, %v782
  %v891 = vmul.f32 %v603, %v786
  %v892 = vmul.f32 %v604, %v790
  %v893 = vmul.f32 %v605, %v794
  %v894 = vmul.f32 %v606, %v762
  %v895 = vmul.f32 %v607, %v766
  %v896 = vmul.f32 %v608, %v770
  %v897 = vmul.f32 %v609, %v774
  %v898 = vmul.f32 %v610, %v778
  %v899 = vmul.f32 %v611, %v782
  %v900 = vmul.f32 %v612, %v786
  %v901 = vmul.f32 %v613, %v790
  %v902 = vmul.f32 %v614, %v794
  %v903 = vmul.f32 %v615, %v762
  %v904 = vmul.f32 %v616, %v766
  %v905 = vmul.f32 %v617, %v770
  %v906 = vmul.f32 %v618, %v774
  %v907 = vmul.f32 %v619, %v778
  %v908 = vmul.f32 %v620, %v782
  %v909 = vmul.f32 %v621, %v786
  %v910 = vmul.f32 %v622, %v790
  %v911 = vmul.f32 %v623, %v794
  %v912 = vmul.f32 %v624, %v762
  %v913 = vmul.f32 %v625, %v766
  %v914 = vmul.f32 %v626, %v770
  %v915 = vmul.f32 %v627, %v774
  %v916 = vmul.f32 %v628, %v778
  %v917 = vmul.f32 %v629, %v782
  %v918 = vmul.f32 %v630, %v786
  %v919 = vmul.f32 %v631, %v790
  %v920 = vmul.f32 %v632, %v794
  %v921 = vmul.f32 %v633, %v762
  %v922 = vmul.f32 %v634, %v766
  %v923 = vmul.f32 %v635, %v770
  %v924 = vmul.f32 %v636, %v774
  %v925 = vmul.f32 %v637, %v778
  %v926 = vmul.f32 %v638, %v782
  %v927 = vmul.f32 %v639, %v786
  %v928 = vmul.f32 %v640, %v790
  %v929 = vmul.f32 %v641, %v794
  %v930 = vmul.f32 %v642, %v762
  %v931 = vmul.f32 %v643, %v766
  %v932 = vmul.f32 %v644, %v770
  %v933 = vmul.f32 %v645, %v774
  %v934 = vmul.f32 %v646, %v778
  %v935 = vmul.f32 %v647, %v782
  %v936 = vmul.f32 %v648, %v786
  %v937 = vmul.f32 %v649, %v790
  %v938 = vmul.f32 %v650, %v794
  %v939 = vmul.f32 %v651, %v762
  %v940 = vmul.f32 %v652, %v766
  %v941 = vmul.f32 %v653, %v770
  %v942 = vmul.f32 %v654, %v774
  %v943 = vmul.f32 %v655, %v778
  %v944 = vmul.f32 %v656, %v782
  %v945 = vmul.f32 %v657, %v786
  %v946 = vmul.f32 %v658, %v790
  %v947 = vmul.f32 %v659, %v794
  %v948 = vmul.f32 %v660, %v762
  %v949 = vmul.f32 %v661, %v766
  %v950 = vmul.f32 %v662, %v770
  %v951 = vmul.f32 %v663, %v774
  %v952 = vmul.f32 %v664, %v778
  %v953 = vmul.f32 %v665, %v782
  %v954 = vmul.f32 %v666, %v786
  %v955 = vmul.f32 %v667, %v790
  %v956 = vmul.f32 %v668, %v794
  %v957 = vmul.f32 %v669, %v762
  %v958 = vmul.f32 %v670, %v766
  %v959 = vmul.f32 %v671, %v770
  %v960 = vmul.f32 %v672, %v774
  %v961 = vmul.f32 %v673, %v778
  %v962 = vmul.f32 %v674, %v782
  %v963 = vmul.f32 %v675, %v786
  %v964 = vmul.f32 %v676, %v790
  %v965 = vmul.f32 %v677, %v794
  %v966 = vmul.f32 %v678, %v762
  %v967 = vmul.f32 %v679, %v766
  %v968 = vmul.f32 %v680, %v770
  %v969 = vmul.f32 %v681, %v774
  %v970 = vmul.f32 %v682, %v778
  %v971 = vmul.f32 %v683, %v782
  %v972 = vmul.f32 %v684, %v786
  %v973 = vmul.f32 %v685, %v790
  %v974 = vmul.f32 %v686, %v794
  %v975 = vmul.f32 %v687, %v762
  %v976 = vmul.f32 %v688, %v766
  %v977 = vmul.f32 %v689, %v770
  %v978 = vmul.f32 %v690, %v774
  %v979 = vmul.f32 %v691, %v778
  %v980 = vmul.f32 %v692, %v782
  %v981 = vmul.f32 %v693, %v786
  %v982 = vmul.f32 %v694, %v790
  %v983 = vmul.f32 %v695, %v794
  %v984 = vmul.f32 %v696, %v762
  %v985 = vmul.f32 %v697, %v766
  %v986 = vmul.f32 %v698, %v770
  %v987 = vmul.f32 %v699, %v774
  %v988 = vmul.f32 %v700, %v778
  %v989 = vmul.f32 %v701, %v782
  %v990 = vmul.f32 %v702, %v786
  %v991 = vmul.f32 %v703, %v790
  %v992 = vmul.f32 %v704, %v794
  %v993 = vmul.f32 %v705, %v762
  %v994 = vmul.f32 %v706, %v766
  %v995 = vmul.f32 %v707, %v770
  %v996 = vmul.f32 %v708, %v774
  %v997 = vmul.f32 %v709, %v778
  %v998 = vmul.f32 %v710, %v782
  %v999 = vmul.f32 %v711, %v786
  %v1000 = vmul.f32 %v712, %v790
  %v1001 = vmul.f32 %v713, %v794
  %v1002 = vmul.f32 %v714, %v762
  %v1003 = vmul.f32 %v715, %v766
  %v1004 = vmul.f32 %v716, %v770
  %v1005 = vmul.f32 %v717, %v774
  %v1006 = vmul.f32 %v718, %v778
  %v1007 = vmul.f32 %v719, %v782
  %v1008 = vmul.f32 %v720, %v786
  %v1009 = vmul.f32 %v721, %v790
  %v1010 = vmul.f32 %v722, %v794
  %v1011 = vmul.f32 %v723, %v762
  %v1012 = vmul.f32 %v724, %v766
  %v1013 = vmul.f32 %v725, %v770
  %v1014 = vmul.f32 %v726, %v774
  %v1015 = vmul.f32 %v727, %v778
  %v1016 = vmul.f32 %v728, %v782
  %v1017 = vmul.f32 %v729, %v786
  %v1018 = vmul.f32 %v730, %v790
  %v1019 = vmul.f32 %v731, %v794
  %v1020 = vmul.f32 %v732, %v762
  %v1021 = vmul.f32 %v733, %v766
  %v1022 = vmul.f32 %v734, %v770
  %v1023 = vmul.f32 %v735, %v774
  %v1024 = vmul.f32 %v736, %v778
  %v1025 = vmul.f32 %v737, %v782
  %v1026 = vmul.f32 %v738, %v786
  %v1027 = vmul.f32 %v739, %v790
  %v1028 = vmul.f32 %v740, %v794
  %v1029 = vmul.f32 %v741, %v762
  %v1030 = vmul.f32 %v742, %v766
  %v1031 = vmul.f32 %v743, %v770
  %v1032 = vmul.f32 %v744, %v774
  %v1033 = vmul.f32 %v745, %v778
  %v1034 = vmul.f32 %v746, %v782
  %v1035 = vmul.f32 %v747, %v786
  %v1036 = vmul.f32 %v748, %v790
  %v1037 = vmul.f32 %v749, %v794
  %v1038 = vmul.f32 %v750, %v762
  %v1039 = vmul.f32 %v751, %v766
  %v1040 = vmul.f32 %v752, %v770
  %v1041 = vmul.f32 %v753, %v774
  %v1042 = vmul.f32 %v754, %v778
  %v1043 = vmul.f32 %v755, %v782
  %v1044 = vmul.f32 %v756, %v786
  %v1045 = vmul.f32 %v757, %v790
  %v1046 = vmul.f32 %v758, %v794
  %v1047 = vld [vmem:[%s2] sm:$0xff]
  %v1048 = vld [vmem:[%s2 + $0x8] sm:$0xff]
  %v1049 = vld [vmem:[%s2 + $0x10] sm:$0xff]
  %v1050 = vld [vmem:[%s2 + $0x18] sm:$0xff]
  %v1051 = vld [vmem:[%s2 + $0x20] sm:$0xff]
  %v1052 = vld [vmem:[%s2 + $0x28] sm:$0xff]
  %v1053 = vld [vmem:[%s2 + $0x30] sm:$0xff]
  %v1054 = vld [vmem:[%s2 + $0x38] sm:$0xff]
  %v1055 = vld [vmem:[%s2 + $0x40] sm:$0xff]
  %v1056 = vld [vmem:[%s2 + $0x48] sm:$0xff]
  %v1057 = vld [vmem:[%s2 + $0x50] sm:$0xff]
  %v1058 = vld [vmem:[%s2 + $0x58] sm:$0xff]
  %v1059 = vld [vmem:[%s2 + $0x60] sm:$0xff]
  %v1060 = vld [vmem:[%s2 + $0x68] sm:$0xff]
  %v1061 = vld [vmem:[%s2 + $0x70] sm:$0xff]
  %v1062 = vld [vmem:[%s2 + $0x78] sm:$0xff]
  %v1063 = vld [vmem:[%s2 + $0x80] sm:$0xff]
  %v1064 = vld [vmem:[%s2 + $0x88] sm:$0xff]
  %v1065 = vld [vmem:[%s2 + $0x90] sm:$0xff]
  %v1066 = vld [vmem:[%s2 + $0x98] sm:$0xff]
  %v1067 = vld [vmem:[%s2 + $0xa0] sm:$0xff]
  %v1068 = vld [vmem:[%s2 + $0xa8] sm:$0xff]
  %v1069 = vld [vmem:[%s2 + $0xb0] sm:$0xff]
  %v1070 = vld [vmem:[%s2 + $0xb8] sm:$0xff]
  %v1071 = vld [vmem:[%s2 + $0xc0] sm:$0xff]
  %v1072 = vld [vmem:[%s2 + $0xc8] sm:$0xff]
  %v1073 = vld [vmem:[%s2 + $0xd0] sm:$0xff]
  %v1074 = vld [vmem:[%s2 + $0xd8] sm:$0xff]
  %v1075 = vld [vmem:[%s2 + $0xe0] sm:$0xff]
  %v1076 = vld [vmem:[%s2 + $0xe8] sm:$0xff]
  %v1077 = vld [vmem:[%s2 + $0xf0] sm:$0xff]
  %v1078 = vld [vmem:[%s2 + $0xf8] sm:$0xff]
  %v1079 = vld [vmem:[%s2 + $0x100] sm:$0xff]
  %v1080 = vld [vmem:[%s2 + $0x108] sm:$0xff]
  %v1081 = vld [vmem:[%s2 + $0x110] sm:$0xff]
  %v1082 = vld [vmem:[%s2 + $0x118] sm:$0xff]
  %v1083 = vld [vmem:[%s2 + $0x120] sm:$0xff]
  %v1084 = vld [vmem:[%s2 + $0x128] sm:$0xff]
  %v1085 = vld [vmem:[%s2 + $0x130] sm:$0xff]
  %v1086 = vld [vmem:[%s2 + $0x138] sm:$0xff]
  %v1087 = vld [vmem:[%s2 + $0x140] sm:$0xff]
  %v1088 = vld [vmem:[%s2 + $0x148] sm:$0xff]
  %v1089 = vld [vmem:[%s2 + $0x150] sm:$0xff]
  %v1090 = vld [vmem:[%s2 + $0x158] sm:$0xff]
  %v1091 = vld [vmem:[%s2 + $0x160] sm:$0xff]
  %v1092 = vld [vmem:[%s2 + $0x168] sm:$0xff]
  %v1093 = vld [vmem:[%s2 + $0x170] sm:$0xff]
  %v1094 = vld [vmem:[%s2 + $0x178] sm:$0xff]
  %v1095 = vld [vmem:[%s2 + $0x180] sm:$0xff]
  %v1096 = vld [vmem:[%s2 + $0x188] sm:$0xff]
  %v1097 = vld [vmem:[%s2 + $0x190] sm:$0xff]
  %v1098 = vld [vmem:[%s2 + $0x198] sm:$0xff]
  %v1099 = vld [vmem:[%s2 + $0x1a0] sm:$0xff]
  %v1100 = vld [vmem:[%s2 + $0x1a8] sm:$0xff]
  %v1101 = vld [vmem:[%s2 + $0x1b0] sm:$0xff]
  %v1102 = vld [vmem:[%s2 + $0x1b8] sm:$0xff]
  %v1103 = vld [vmem:[%s2 + $0x1c0] sm:$0xff]
  %v1104 = vld [vmem:[%s2 + $0x1c8] sm:$0xff]
  %v1105 = vld [vmem:[%s2 + $0x1d0] sm:$0xff]
  %v1106 = vld [vmem:[%s2 + $0x1d8] sm:$0xff]
  %v1107 = vld [vmem:[%s2 + $0x1e0] sm:$0xff]
  %v1108 = vld [vmem:[%s2 + $0x1e8] sm:$0xff]
  %v1109 = vld [vmem:[%s2 + $0x1f0] sm:$0xff]
  %v1110 = vld [vmem:[%s2 + $0x1f8] sm:$0xff]
  %v1111 = vld [vmem:[%s2 + $0x200] sm:$0xff]
  %v1112 = vld [vmem:[%s2 + $0x208] sm:$0xff]
  %v1113 = vld [vmem:[%s2 + $0x210] sm:$0xff]
  %v1114 = vld [vmem:[%s2 + $0x218] sm:$0xff]
  %v1115 = vld [vmem:[%s2 + $0x220] sm:$0xff]
  %v1116 = vld [vmem:[%s2 + $0x228] sm:$0xff]
  %v1117 = vld [vmem:[%s2 + $0x230] sm:$0xff]
  %v1118 = vld [vmem:[%s2 + $0x238] sm:$0xff]
  %v1119 = vld [vmem:[%s2 + $0x240] sm:$0xff]
  %v1120 = vld [vmem:[%s2 + $0x248] sm:$0xff]
  %v1121 = vld [vmem:[%s2 + $0x250] sm:$0xff]
  %v1122 = vld [vmem:[%s2 + $0x258] sm:$0xff]
  %v1123 = vld [vmem:[%s2 + $0x260] sm:$0xff]
  %v1124 = vld [vmem:[%s2 + $0x268] sm:$0xff]
  %v1125 = vld [vmem:[%s2 + $0x270] sm:$0xff]
  %v1126 = vld [vmem:[%s2 + $0x278] sm:$0xff]
  %v1127 = vld [vmem:[%s2 + $0x280] sm:$0xff]
  %v1128 = vld [vmem:[%s2 + $0x288] sm:$0xff]
  %v1129 = vld [vmem:[%s2 + $0x290] sm:$0xff]
  %v1130 = vld [vmem:[%s2 + $0x298] sm:$0xff]
  %v1131 = vld [vmem:[%s2 + $0x2a0] sm:$0xff]
  %v1132 = vld [vmem:[%s2 + $0x2a8] sm:$0xff]
  %v1133 = vld [vmem:[%s2 + $0x2b0] sm:$0xff]
  %v1134 = vld [vmem:[%s2 + $0x2b8] sm:$0xff]
  %v1135 = vld [vmem:[%s2 + $0x2c0] sm:$0xff]
  %v1136 = vld [vmem:[%s2 + $0x2c8] sm:$0xff]
  %v1137 = vld [vmem:[%s2 + $0x2d0] sm:$0xff]
  %v1138 = vld [vmem:[%s2 + $0x2d8] sm:$0xff]
  %v1139 = vld [vmem:[%s2 + $0x2e0] sm:$0xff]
  %v1140 = vld [vmem:[%s2 + $0x2e8] sm:$0xff]
  %v1141 = vld [vmem:[%s2 + $0x2f0] sm:$0xff]
  %v1142 = vld [vmem:[%s2 + $0x2f8] sm:$0xff]
  %v1143 = vld [vmem:[%s2 + $0x300] sm:$0xff]
  %v1144 = vld [vmem:[%s2 + $0x308] sm:$0xff]
  %v1145 = vld [vmem:[%s2 + $0x310] sm:$0xff]
  %v1146 = vld [vmem:[%s2 + $0x318] sm:$0xff]
  %v1147 = vld [vmem:[%s2 + $0x320] sm:$0xff]
  %v1148 = vld [vmem:[%s2 + $0x328] sm:$0xff]
  %v1149 = vld [vmem:[%s2 + $0x330] sm:$0xff]
  %v1150 = vld [vmem:[%s2 + $0x338] sm:$0xff]
  %v1151 = vld [vmem:[%s2 + $0x340] sm:$0xff]
  %v1152 = vld [vmem:[%s2 + $0x348] sm:$0xff]
  %v1153 = vld [vmem:[%s2 + $0x350] sm:$0xff]
  %v1154 = vld [vmem:[%s2 + $0x358] sm:$0xff]
  %v1155 = vld [vmem:[%s2 + $0x360] sm:$0xff]
  %v1156 = vld [vmem:[%s2 + $0x368] sm:$0xff]
  %v1157 = vld [vmem:[%s2 + $0x370] sm:$0xff]
  %v1158 = vld [vmem:[%s2 + $0x378] sm:$0xff]
  %v1159 = vld [vmem:[%s2 + $0x380] sm:$0xff]
  %v1160 = vld [vmem:[%s2 + $0x388] sm:$0xff]
  %v1161 = vld [vmem:[%s2 + $0x390] sm:$0xff]
  %v1162 = vld [vmem:[%s2 + $0x398] sm:$0xff]
  %v1163 = vld [vmem:[%s2 + $0x3a0] sm:$0xff]
  %v1164 = vld [vmem:[%s2 + $0x3a8] sm:$0xff]
  %v1165 = vld [vmem:[%s2 + $0x3b0] sm:$0xff]
  %v1166 = vld [vmem:[%s2 + $0x3b8] sm:$0xff]
  %v1167 = vld [vmem:[%s2 + $0x3c0] sm:$0xff]
  %v1168 = vld [vmem:[%s2 + $0x3c8] sm:$0xff]
  %v1169 = vld [vmem:[%s2 + $0x3d0] sm:$0xff]
  %v1170 = vld [vmem:[%s2 + $0x3d8] sm:$0xff]
  %v1171 = vld [vmem:[%s2 + $0x3e0] sm:$0xff]
  %v1172 = vld [vmem:[%s2 + $0x3e8] sm:$0xff]
  %v1173 = vld [vmem:[%s2 + $0x3f0] sm:$0xff]
  %v1174 = vld [vmem:[%s2 + $0x3f8] sm:$0xff]
  %v1175 = vld [vmem:[%s2 + $0x400] sm:$0xff]
  %v1176 = vld [vmem:[%s2 + $0x408] sm:$0xff]
  %v1177 = vld [vmem:[%s2 + $0x410] sm:$0xff]
  %v1178 = vld [vmem:[%s2 + $0x418] sm:$0xff]
  %v1179 = vld [vmem:[%s2 + $0x420] sm:$0xff]
  %v1180 = vld [vmem:[%s2 + $0x428] sm:$0xff]
  %v1181 = vld [vmem:[%s2 + $0x430] sm:$0xff]
  %v1182 = vld [vmem:[%s2 + $0x438] sm:$0xff]
  %v1183 = vld [vmem:[%s2 + $0x440] sm:$0xff]
  %v1184 = vld [vmem:[%s2 + $0x448] sm:$0xff]
  %v1185 = vld [vmem:[%s2 + $0x450] sm:$0xff]
  %v1186 = vld [vmem:[%s2 + $0x458] sm:$0xff]
  %v1187 = vld [vmem:[%s2 + $0x460] sm:$0xff]
  %v1188 = vld [vmem:[%s2 + $0x468] sm:$0xff]
  %v1189 = vld [vmem:[%s2 + $0x470] sm:$0xff]
  %v1190 = vld [vmem:[%s2 + $0x478] sm:$0xff]
  %v1191 = vld [vmem:[%s2 + $0x480] sm:$0xff]
  %v1192 = vld [vmem:[%s2 + $0x488] sm:$0xff]
  %v1193 = vld [vmem:[%s2 + $0x490] sm:$0xff]
  %v1194 = vld [vmem:[%s2 + $0x498] sm:$0xff]
  %v1195 = vld [vmem:[%s2 + $0x4a0] sm:$0xff]
  %v1196 = vld [vmem:[%s2 + $0x4a8] sm:$0xff]
  %v1197 = vld [vmem:[%s2 + $0x4b0] sm:$0xff]
  %v1198 = vld [vmem:[%s2 + $0x4b8] sm:$0xff]
  %v1199 = vld [vmem:[%s2 + $0x4c0] sm:$0xff]
  %v1200 = vld [vmem:[%s2 + $0x4c8] sm:$0xff]
  %v1201 = vld [vmem:[%s2 + $0x4d0] sm:$0xff]
  %v1202 = vld [vmem:[%s2 + $0x4d8] sm:$0xff]
  %v1203 = vld [vmem:[%s2 + $0x4e0] sm:$0xff]
  %v1204 = vld [vmem:[%s2 + $0x4e8] sm:$0xff]
  %v1205 = vld [vmem:[%s2 + $0x4f0] sm:$0xff]
  %v1206 = vld [vmem:[%s2 + $0x4f8] sm:$0xff]
  %v1207 = vld [vmem:[%s2 + $0x500] sm:$0xff]
  %v1208 = vld [vmem:[%s2 + $0x508] sm:$0xff]
  %v1209 = vld [vmem:[%s2 + $0x510] sm:$0xff]
  %v1210 = vld [vmem:[%s2 + $0x518] sm:$0xff]
  %v1211 = vld [vmem:[%s2 + $0x520] sm:$0xff]
  %v1212 = vld [vmem:[%s2 + $0x528] sm:$0xff]
  %v1213 = vld [vmem:[%s2 + $0x530] sm:$0xff]
  %v1214 = vld [vmem:[%s2 + $0x538] sm:$0xff]
  %v1215 = vld [vmem:[%s2 + $0x540] sm:$0xff]
  %v1216 = vld [vmem:[%s2 + $0x548] sm:$0xff]
  %v1217 = vld [vmem:[%s2 + $0x550] sm:$0xff]
  %v1218 = vld [vmem:[%s2 + $0x558] sm:$0xff]
  %v1219 = vld [vmem:[%s2 + $0x560] sm:$0xff]
  %v1220 = vld [vmem:[%s2 + $0x568] sm:$0xff]
  %v1221 = vld [vmem:[%s2 + $0x570] sm:$0xff]
  %v1222 = vld [vmem:[%s2 + $0x578] sm:$0xff]
  %v1223 = vld [vmem:[%s2 + $0x580] sm:$0xff]
  %v1224 = vld [vmem:[%s2 + $0x588] sm:$0xff]
  %v1225 = vld [vmem:[%s2 + $0x590] sm:$0xff]
  %v1226 = vld [vmem:[%s2 + $0x598] sm:$0xff]
  %v1227 = vld [vmem:[%s2 + $0x5a0] sm:$0xff]
  %v1228 = vld [vmem:[%s2 + $0x5a8] sm:$0xff]
  %v1229 = vld [vmem:[%s2 + $0x5b0] sm:$0xff]
  %v1230 = vld [vmem:[%s2 + $0x5b8] sm:$0xff]
  %v1231 = vld [vmem:[%s2 + $0x5c0] sm:$0xff]
  %v1232 = vld [vmem:[%s2 + $0x5c8] sm:$0xff]
  %v1233 = vld [vmem:[%s2 + $0x5d0] sm:$0xff]
  %v1234 = vld [vmem:[%s2 + $0x5d8] sm:$0xff]
  %v1235 = vld [vmem:[%s2 + $0x5e0] sm:$0xff]
  %v1236 = vld [vmem:[%s2 + $0x5e8] sm:$0xff]
  %v1237 = vld [vmem:[%s2 + $0x5f0] sm:$0xff]
  %v1238 = vld [vmem:[%s2 + $0x5f8] sm:$0xff]
  %v1239 = vld [vmem:[%s2 + $0x600] sm:$0xff]
  %v1240 = vld [vmem:[%s2 + $0x608] sm:$0xff]
  %v1241 = vld [vmem:[%s2 + $0x610] sm:$0xff]
  %v1242 = vld [vmem:[%s2 + $0x618] sm:$0xff]
  %v1243 = vld [vmem:[%s2 + $0x620] sm:$0xff]
  %v1244 = vld [vmem:[%s2 + $0x628] sm:$0xff]
  %v1245 = vld [vmem:[%s2 + $0x630] sm:$0xff]
  %v1246 = vld [vmem:[%s2 + $0x638] sm:$0xff]
  %v1247 = vld [vmem:[%s2 + $0x640] sm:$0xff]
  %v1248 = vld [vmem:[%s2 + $0x648] sm:$0xff]
  %v1249 = vld [vmem:[%s2 + $0x650] sm:$0xff]
  %v1250 = vld [vmem:[%s2 + $0x658] sm:$0xff]
  %v1251 = vld [vmem:[%s2 + $0x660] sm:$0xff]
  %v1252 = vld [vmem:[%s2 + $0x668] sm:$0xff]
  %v1253 = vld [vmem:[%s2 + $0x670] sm:$0xff]
  %v1254 = vld [vmem:[%s2 + $0x678] sm:$0xff]
  %v1255 = vld [vmem:[%s2 + $0x680] sm:$0xff]
  %v1256 = vld [vmem:[%s2 + $0x688] sm:$0xff]
  %v1257 = vld [vmem:[%s2 + $0x690] sm:$0xff]
  %v1258 = vld [vmem:[%s2 + $0x698] sm:$0xff]
  %v1259 = vld [vmem:[%s2 + $0x6a0] sm:$0xff]
  %v1260 = vld [vmem:[%s2 + $0x6a8] sm:$0xff]
  %v1261 = vld [vmem:[%s2 + $0x6b0] sm:$0xff]
  %v1262 = vld [vmem:[%s2 + $0x6b8] sm:$0xff]
  %v1263 = vld [vmem:[%s2 + $0x6c0] sm:$0xff]
  %v1264 = vld [vmem:[%s2 + $0x6c8] sm:$0xff]
  %v1265 = vld [vmem:[%s2 + $0x6d0] sm:$0xff]
  %v1266 = vld [vmem:[%s2 + $0x6d8] sm:$0xff]
  %v1267 = vld [vmem:[%s2 + $0x6e0] sm:$0xff]
  %v1268 = vld [vmem:[%s2 + $0x6e8] sm:$0xff]
  %v1269 = vld [vmem:[%s2 + $0x6f0] sm:$0xff]
  %v1270 = vld [vmem:[%s2 + $0x6f8] sm:$0xff]
  %v1271 = vld [vmem:[%s2 + $0x700] sm:$0xff]
  %v1272 = vld [vmem:[%s2 + $0x708] sm:$0xff]
  %v1273 = vld [vmem:[%s2 + $0x710] sm:$0xff]
  %v1274 = vld [vmem:[%s2 + $0x718] sm:$0xff]
  %v1275 = vld [vmem:[%s2 + $0x720] sm:$0xff]
  %v1276 = vld [vmem:[%s2 + $0x728] sm:$0xff]
  %v1277 = vld [vmem:[%s2 + $0x730] sm:$0xff]
  %v1278 = vld [vmem:[%s2 + $0x738] sm:$0xff]
  %v1279 = vld [vmem:[%s2 + $0x740] sm:$0xff]
  %v1280 = vld [vmem:[%s2 + $0x748] sm:$0xff]
  %v1281 = vld [vmem:[%s2 + $0x750] sm:$0xff]
  %v1282 = vld [vmem:[%s2 + $0x758] sm:$0xff]
  %v1283 = vld [vmem:[%s2 + $0x760] sm:$0xff]
  %v1284 = vld [vmem:[%s2 + $0x768] sm:$0xff]
  %v1285 = vld [vmem:[%s2 + $0x770] sm:$0xff]
  %v1286 = vld [vmem:[%s2 + $0x778] sm:$0xff]
  %v1287 = vld [vmem:[%s2 + $0x780] sm:$0xff]
  %v1288 = vld [vmem:[%s2 + $0x788] sm:$0xff]
  %v1289 = vld [vmem:[%s2 + $0x790] sm:$0xff]
  %v1290 = vld [vmem:[%s2 + $0x798] sm:$0xff]
  %v1291 = vld [vmem:[%s2 + $0x7a0] sm:$0xff]
  %v1292 = vld [vmem:[%s2 + $0x7a8] sm:$0xff]
  %v1293 = vld [vmem:[%s2 + $0x7b0] sm:$0xff]
  %v1294 = vld [vmem:[%s2 + $0x7b8] sm:$0xff]
  %v1295 = vld [vmem:[%s2 + $0x7c0] sm:$0xff]
  %v1296 = vld [vmem:[%s2 + $0x7c8] sm:$0xff]
  %v1297 = vld [vmem:[%s2 + $0x7d0] sm:$0xff]
  %v1298 = vld [vmem:[%s2 + $0x7d8] sm:$0xff]
  %v1299 = vld [vmem:[%s2 + $0x7e0] sm:$0xff]
  %v1300 = vld [vmem:[%s2 + $0x7e8] sm:$0xff]
  %v1301 = vld [vmem:[%s2 + $0x7f0] sm:$0xff]
  %v1302 = vld [vmem:[%s2 + $0x7f8] sm:$0xff]
  %v1303 = vld [vmem:[%s2 + $0x800] sm:$0xff]
  %v1304 = vld [vmem:[%s2 + $0x808] sm:$0xff]
  %v1305 = vld [vmem:[%s2 + $0x810] sm:$0xff]
  %v1306 = vld [vmem:[%s2 + $0x818] sm:$0xff]
  %v1307 = vld [vmem:[%s2 + $0x820] sm:$0xff]
  %v1308 = vld [vmem:[%s2 + $0x828] sm:$0xff]
  %v1309 = vld [vmem:[%s2 + $0x830] sm:$0xff]
  %v1310 = vld [vmem:[%s2 + $0x838] sm:$0xff]
  %v1311 = vld [vmem:[%s2 + $0x840] sm:$0xff]
  %v1312 = vld [vmem:[%s2 + $0x848] sm:$0xff]
  %v1313 = vld [vmem:[%s2 + $0x850] sm:$0xff]
  %v1314 = vld [vmem:[%s2 + $0x858] sm:$0xff]
  %v1315 = vld [vmem:[%s2 + $0x860] sm:$0xff]
  %v1316 = vld [vmem:[%s2 + $0x868] sm:$0xff]
  %v1317 = vld [vmem:[%s2 + $0x870] sm:$0xff]
  %v1318 = vld [vmem:[%s2 + $0x878] sm:$0xff]
  %v1319 = vld [vmem:[%s2 + $0x880] sm:$0xff]
  %v1320 = vld [vmem:[%s2 + $0x888] sm:$0xff]
  %v1321 = vld [vmem:[%s2 + $0x890] sm:$0xff]
  %v1322 = vld [vmem:[%s2 + $0x898] sm:$0xff]
  %v1323 = vld [vmem:[%s2 + $0x8a0] sm:$0xff]
  %v1324 = vld [vmem:[%s2 + $0x8a8] sm:$0xff]
  %v1325 = vld [vmem:[%s2 + $0x8b0] sm:$0xff]
  %v1326 = vld [vmem:[%s2 + $0x8b8] sm:$0xff]
  %v1327 = vld [vmem:[%s2 + $0x8c0] sm:$0xff]
  %v1328 = vld [vmem:[%s2 + $0x8c8] sm:$0xff]
  %v1329 = vld [vmem:[%s2 + $0x8d0] sm:$0xff]
  %v1330 = vld [vmem:[%s2 + $0x8d8] sm:$0xff]
  %v1331 = vld [vmem:[%s2 + $0x8e0] sm:$0xff]
  %v1332 = vld [vmem:[%s2 + $0x8e8] sm:$0xff]
  %v1333 = vld [vmem:[%s2 + $0x8f0] sm:$0xff]
  %v1334 = vld [vmem:[%s2 + $0x8f8] sm:$0xff]
  %1335 = vmatprep.subr.mxu0 %v1048
  %1336 = vmatpush1.msra.mxu0 %v1047
  %1337 = vmatprep.subr.mxu0 %v1050
  %1338 = vmatpush1.msra.mxu0 %v1049
  %1339 = vmatprep.subr.mxu0 %v1052
  %1340 = vmatpush1.msra.mxu0 %v1051
  %1341 = vmatprep.subr.mxu0 %v1054
  %1342 = vmatpush1.msra.mxu0 %v1053
  %1343 = vmatprep.subr.mxu0 %v1056
  %1344 = vmatpush1.msra.mxu0 %v1055
  %1345 = vmatprep.subr.mxu0 %v1058
  %1346 = vmatpush1.msra.mxu0 %v1057
  %1347 = vmatprep.subr.mxu0 %v1060
  %1348 = vmatpush1.msra.mxu0 %v1059
  %1349 = vmatprep.subr.mxu0 %v1062
  %1350 = vmatpush1.msra.mxu0 %v1061
  %1351 = vmatprep.subr.mxu0 %v1064
  %1352 = vmatpush1.msra.mxu0 %v1063
  %1353 = vmatprep.subr.mxu0 %v1066
  %1354 = vmatpush1.msra.mxu0 %v1065
  %1355 = vmatprep.subr.mxu0 %v1068
  %1356 = vmatpush1.msra.mxu0 %v1067
  %1357 = vmatprep.subr.mxu0 %v1070
  %1358 = vmatpush1.msra.mxu0 %v1069
  %1359 = vmatprep.subr.mxu0 %v1072
  %1360 = vmatpush1.msra.mxu0 %v1071
  %1361 = vmatprep.subr.mxu0 %v1074
  %1362 = vmatpush1.msra.mxu0 %v1073
  %1363 = vmatprep.subr.mxu0 %v1076
  %1364 = vmatpush1.msra.mxu0 %v1075
  %1365 = vmatprep.subr.mxu0 %v1078
  %1366 = vmatpush1.msra.mxu0 %v1077
  %1367 = vmatprep.subr.mxu0 %v1080
  %1368 = vmatpush1.msra.mxu0 %v1079
  %1369 = vmatprep.subr.mxu0 %v1082
  %1370 = vmatpush1.msra.mxu0 %v1081
  %1371 = vmatprep.subr.mxu0 %v1084
  %1372 = vmatpush1.msra.mxu0 %v1083
  %1373 = vmatprep.subr.mxu0 %v1086
  %1374 = vmatpush1.msra.mxu0 %v1085
  %1375 = vmatprep.subr.mxu0 %v1088
  %1376 = vmatpush1.msra.mxu0 %v1087
  %1377 = vmatprep.subr.mxu0 %v1090
  %1378 = vmatpush1.msra.mxu0 %v1089
  %1379 = vmatprep.subr.mxu0 %v1092
  %1380 = vmatpush1.msra.mxu0 %v1091
  %1381 = vmatprep.subr.mxu0 %v1094
  %1382 = vmatpush1.msra.mxu0 %v1093
  %1383 = vmatprep.subr.mxu0 %v1096
  %1384 = vmatpush1.msra.mxu0 %v1095
  %1385 = vmatprep.subr.mxu0 %v1098
  %1386 = vmatpush1.msra.mxu0 %v1097
  %1387 = vmatprep.subr.mxu0 %v1100
  %1388 = vmatpush1.msra.mxu0 %v1099
  %1389 = vmatprep.subr.mxu0 %v1102
  %1390 = vmatpush1.msra.mxu0 %v1101
  %1391 = vmatprep.subr.mxu0 %v1104
  %1392 = vmatpush1.msra.mxu0 %v1103
  %1393 = vmatprep.subr.mxu0 %v1106
  %1394 = vmatpush1.msra.mxu0 %v1105
  %1395 = vmatprep.subr.mxu0 %v1108
  %1396 = vmatpush1.msra.mxu0 %v1107
  %1397 = vmatprep.subr.mxu0 %v1110
  %1398 = vmatpush1.msra.mxu0 %v1109
  %1399 = vmatprep.mubr.f32.mxu0 %v796
  %1400 = vmatmul.mubr.f32.gmra.mrb[0].mxu0 %v795
  %v1401 = vpop.f32.mrb[0].mxu0
  %v1402 = vadd.f32 0.0, %v1401
  %v1403 = vpop.f32.mrb[0].mxu0
  %v1404 = vadd.f32 0.0, %v1403
  %1405 = vmatprep.mubr.f32.mxu0 %v805
  %1406 = vmatmul.mubr.f32.gmra.mrb[0].mxu0 %v804
  %v1407 = vpop.f32.mrb[0].mxu0
  %v1408 = vadd.f32 0.0, %v1407
  %v1409 = vpop.f32.mrb[0].mxu0
  %v1410 = vadd.f32 0.0, %v1409
  %1411 = vmatprep.mubr.f32.mxu0 %v814
  %1412 = vmatmul.mubr.f32.gmra.mrb[0].mxu0 %v813
  %v1413 = vpop.f32.mrb[0].mxu0
  %v1414 = vadd.f32 0.0, %v1413
  %v1415 = vpop.f32.mrb[0].mxu0
  %v1416 = vadd.f32 0.0, %v1415
  %1417 = vmatprep.mubr.f32.mxu0 %v823
  %1418 = vmatmul.mubr.f32.gmra.mrb[0].mxu0 %v822
  %v1419 = vpop.f32.mrb[0].mxu0
  %v1420 = vadd.f32 0.0, %v1419
  %v1421 = vpop.f32.mrb[0].mxu0
  %v1422 = vadd.f32 0.0, %v1421
  %1423 = vmatprep.mubr.f32.mxu0 %v832
  %1424 = vmatmul.mubr.f32.gmra.mrb[0].mxu0 %v831
  %v1425 = vpop.f32.mrb[0].mxu0
  %v1426 = vadd.f32 0.0, %v1425
  %v1427 = vpop.f32.mrb[0].mxu0
  %v1428 = vadd.f32 0.0, %v1427
  %1429 = vmatprep.mubr.f32.mxu0 %v841
  %1430 = vmatmul.mubr.f32.gmra.mrb[0].mxu0 %v840
  %v1431 = vpop.f32.mrb[0].mxu0
  %v1432 = vadd.f32 0.0, %v1431
  %v1433 = vpop.f32.mrb[0].mxu0
  %v1434 = vadd.f32 0.0, %v1433
  %1435 = vmatprep.mubr.f32.mxu0 %v850
  %1436 = vmatmul.mubr.f32.gmra.mrb[0].mxu0 %v849
  %v1437 = vpop.f32.mrb[0].mxu0
  %v1438 = vadd.f32 0.0, %v1437
  %v1439 = vpop.f32.mrb[0].mxu0
  %v1440 = vadd.f32 0.0, %v1439
  %1441 = vmatprep.mubr.f32.mxu0 %v859
  %1442 = vmatmul.mubr.f32.gmra.mrb[0].mxu0 %v858
  %v1443 = vpop.f32.mrb[0].mxu0
  %v1444 = vadd.f32 0.0, %v1443
  %v1445 = vpop.f32.mrb[0].mxu0
  %v1446 = vadd.f32 0.0, %v1445
  %1447 = vmatprep.mubr.f32.mxu0 %v868
  %1448 = vmatmul.mubr.f32.gmra.mrb[0].mxu0 %v867
  %v1449 = vpop.f32.mrb[0].mxu0
  %v1450 = vadd.f32 0.0, %v1449
  %v1451 = vpop.f32.mrb[0].mxu0
  %v1452 = vadd.f32 0.0, %v1451
  %1453 = vmatprep.mubr.f32.mxu0 %v877
  %1454 = vmatmul.mubr.f32.gmra.mrb[0].mxu0 %v876
  %v1455 = vpop.f32.mrb[0].mxu0
  %v1456 = vadd.f32 0.0, %v1455
  %v1457 = vpop.f32.mrb[0].mxu0
  %v1458 = vadd.f32 0.0, %v1457
  %1459 = vmatprep.mubr.f32.mxu0 %v886
  %1460 = vmatmul.mubr.f32.gmra.mrb[0].mxu0 %v885
  %v1461 = vpop.f32.mrb[0].mxu0
  %v1462 = vadd.f32 0.0, %v1461
  %v1463 = vpop.f32.mrb[0].mxu0
  %v1464 = vadd.f32 0.0, %v1463
  %1465 = vmatprep.mubr.f32.mxu0 %v895
  %1466 = vmatmul.mubr.f32.gmra.mrb[0].mxu0 %v894
  %v1467 = vpop.f32.mrb[0].mxu0
  %v1468 = vadd.f32 0.0, %v1467
  %v1469 = vpop.f32.mrb[0].mxu0
  %v1470 = vadd.f32 0.0, %v1469
  %1471 = vmatprep.mubr.f32.mxu0 %v904
  %1472 = vmatmul.mubr.f32.gmra.mrb[0].mxu0 %v903
  %v1473 = vpop.f32.mrb[0].mxu0
  %v1474 = vadd.f32 0.0, %v1473
  %v1475 = vpop.f32.mrb[0].mxu0
  %v1476 = vadd.f32 0.0, %v1475
  %1477 = vmatprep.mubr.f32.mxu0 %v913
  %1478 = vmatmul.mubr.f32.gmra.mrb[0].mxu0 %v912
  %v1479 = vpop.f32.mrb[0].mxu0
  %v1480 = vadd.f32 0.0, %v1479
  %v1481 = vpop.f32.mrb[0].mxu0
  %v1482 = vadd.f32 0.0, %v1481
  %1483 = vmatprep.mubr.f32.mxu0 %v922
  %1484 = vmatmul.mubr.f32.gmra.mrb[0].mxu0 %v921
  %v1485 = vpop.f32.mrb[0].mxu0
  %v1486 = vadd.f32 0.0, %v1485
  %v1487 = vpop.f32.mrb[0].mxu0
  %v1488 = vadd.f32 0.0, %v1487
  %1489 = vmatprep.mubr.f32.mxu0 %v931
  %1490 = vmatmul.mubr.f32.gmra.mrb[0].mxu0 %v930
  %v1491 = vpop.f32.mrb[0].mxu0
  %v1492 = vadd.f32 0.0, %v1491
  %v1493 = vpop.f32.mrb[0].mxu0
  %v1494 = vadd.f32 0.0, %v1493
  %1495 = vmatprep.mubr.f32.mxu0 %v940
  %1496 = vmatmul.mubr.f32.gmra.mrb[0].mxu0 %v939
  %v1497 = vpop.f32.mrb[0].mxu0
  %v1498 = vadd.f32 0.0, %v1497
  %v1499 = vpop.f32.mrb[0].mxu0
  %v1500 = vadd.f32 0.0, %v1499
  %1501 = vmatprep.mubr.f32.mxu0 %v949
  %1502 = vmatmul.mubr.f32.gmra.mrb[0].mxu0 %v948
  %v1503 = vpop.f32.mrb[0].mxu0
  %v1504 = vadd.f32 0.0, %v1503
  %v1505 = vpop.f32.mrb[0].mxu0
  %v1506 = vadd.f32 0.0, %v1505
  %1507 = vmatprep.mubr.f32.mxu0 %v958
  %1508 = vmatmul.mubr.f32.gmra.mrb[0].mxu0 %v957
  %v1509 = vpop.f32.mrb[0].mxu0
  %v1510 = vadd.f32 0.0, %v1509
  %v1511 = vpop.f32.mrb[0].mxu0
  %v1512 = vadd.f32 0.0, %v1511
  %1513 = vmatprep.mubr.f32.mxu0 %v967
  %1514 = vmatmul.mubr.f32.gmra.mrb[0].mxu0 %v966
  %v1515 = vpop.f32.mrb[0].mxu0
  %v1516 = vadd.f32 0.0, %v1515
  %v1517 = vpop.f32.mrb[0].mxu0
  %v1518 = vadd.f32 0.0, %v1517
  %1519 = vmatprep.mubr.f32.mxu0 %v976
  %1520 = vmatmul.mubr.f32.gmra.mrb[0].mxu0 %v975
  %v1521 = vpop.f32.mrb[0].mxu0
  %v1522 = vadd.f32 0.0, %v1521
  %v1523 = vpop.f32.mrb[0].mxu0
  %v1524 = vadd.f32 0.0, %v1523
  %1525 = vmatprep.mubr.f32.mxu0 %v985
  %1526 = vmatmul.mubr.f32.gmra.mrb[0].mxu0 %v984
  %v1527 = vpop.f32.mrb[0].mxu0
  %v1528 = vadd.f32 0.0, %v1527
  %v1529 = vpop.f32.mrb[0].mxu0
  %v1530 = vadd.f32 0.0, %v1529
  %1531 = vmatprep.mubr.f32.mxu0 %v994
  %1532 = vmatmul.mubr.f32.gmra.mrb[0].mxu0 %v993
  %v1533 = vpop.f32.mrb[0].mxu0
  %v1534 = vadd.f32 0.0, %v1533
  %v1535 = vpop.f32.mrb[0].mxu0
  %v1536 = vadd.f32 0.0, %v1535
  %1537 = vmatprep.mubr.f32.mxu0 %v1003
  %1538 = vmatmul.mubr.f32.gmra.mrb[0].mxu0 %v1002
  %v1539 = vpop.f32.mrb[0].mxu0
  %v1540 = vadd.f32 0.0, %v1539
  %v1541 = vpop.f32.mrb[0].mxu0
  %v1542 = vadd.f32 0.0, %v1541
  %1543 = vmatprep.mubr.f32.mxu0 %v1012
  %1544 = vmatmul.mubr.f32.gmra.mrb[0].mxu0 %v1011
  %v1545 = vpop.f32.mrb[0].mxu0
  %v1546 = vadd.f32 0.0, %v1545
  %v1547 = vpop.f32.mrb[0].mxu0
  %v1548 = vadd.f32 0.0, %v1547
  %1549 = vmatprep.mubr.f32.mxu0 %v1021
  %1550 = vmatmul.mubr.f32.gmra.mrb[0].mxu0 %v1020
  %v1551 = vpop.f32.mrb[0].mxu0
  %v1552 = vadd.f32 0.0, %v1551
  %v1553 = vpop.f32.mrb[0].mxu0
  %v1554 = vadd.f32 0.0, %v1553
  %1555 = vmatprep.mubr.f32.mxu0 %v1030
  %1556 = vmatmul.mubr.f32.gmra.mrb[0].mxu0 %v1029
  %v1557 = vpop.f32.mrb[0].mxu0
  %v1558 = vadd.f32 0.0, %v1557
  %v1559 = vpop.f32.mrb[0].mxu0
  %v1560 = vadd.f32 0.0, %v1559
  %1561 = vmatprep.mubr.f32.mxu0 %v1039
  %1562 = vmatmul.mubr.f32.gmra.mrb[0].mxu0 %v1038
  %v1563 = vpop.f32.mrb[0].mxu0
  %v1564 = vadd.f32 0.0, %v1563
  %v1565 = vpop.f32.mrb[0].mxu0
  %v1566 = vadd.f32 0.0, %v1565
  %1567 = vdwg.mxu0
  %1568 = vmatprep.subr.mxu0 %v1112
  %1569 = vmatpush1.msra.mxu0 %v1111
  %1570 = vmatprep.subr.mxu0 %v1114
  %1571 = vmatpush1.msra.mxu0 %v1113
  %1572 = vmatprep.subr.mxu0 %v1116
  %1573 = vmatpush1.msra.mxu0 %v1115
  %1574 = vmatprep.subr.mxu0 %v1118
  %1575 = vmatpush1.msra.mxu0 %v1117
  %1576 = vmatprep.subr.mxu0 %v1120
  %1577 = vmatpush1.msra.mxu0 %v1119
  %1578 = vmatprep.subr.mxu0 %v1122
  %1579 = vmatpush1.msra.mxu0 %v1121
  %1580 = vmatprep.subr.mxu0 %v1124
  %1581 = vmatpush1.msra.mxu0 %v1123
  %1582 = vmatprep.subr.mxu0 %v1126
  %1583 = vmatpush1.msra.mxu0 %v1125
  %1584 = vmatprep.subr.mxu0 %v1128
  %1585 = vmatpush1.msra.mxu0 %v1127
  %1586 = vmatprep.subr.mxu0 %v1130
  %1587 = vmatpush1.msra.mxu0 %v1129
  %1588 = vmatprep.subr.mxu0 %v1132
  %1589 = vmatpush1.msra.mxu0 %v1131
  %1590 = vmatprep.subr.mxu0 %v1134
  %1591 = vmatpush1.msra.mxu0 %v1133
  %1592 = vmatprep.subr.mxu0 %v1136
  %1593 = vmatpush1.msra.mxu0 %v1135
  %1594 = vmatprep.subr.mxu0 %v1138
  %1595 = vmatpush1.msra.mxu0 %v1137
  %1596 = vmatprep.subr.mxu0 %v1140
  %1597 = vmatpush1.msra.mxu0 %v1139
  %1598 = vmatprep.subr.mxu0 %v1142
  %1599 = vmatpush1.msra.mxu0 %v1141
  %1600 = vmatprep.subr.mxu0 %v1144
  %1601 = vmatpush1.msra.mxu0 %v1143
  %1602 = vmatprep.subr.mxu0 %v1146
  %1603 = vmatpush1.msra.mxu0 %v1145
  %1604 = vmatprep.subr.mxu0 %v1148
  %1605 = vmatpush1.msra.mxu0 %v1147
  %1606 = vmatprep.subr.mxu0 %v1150
  %1607 = vmatpush1.msra.mxu0 %v1149
  %1608 = vmatprep.subr.mxu0 %v1152
  %1609 = vmatpush1.msra.mxu0 %v1151
  %1610 = vmatprep.subr.mxu0 %v1154
  %1611 = vmatpush1.msra.mxu0 %v1153
  %1612 = vmatprep.subr.mxu0 %v1156
  %1613 = vmatpush1.msra.mxu0 %v1155
  %1614 = vmatprep.subr.mxu0 %v1158
  %1615 = vmatpush1.msra.mxu0 %v1157
  %1616 = vmatprep.subr.mxu0 %v1160
  %1617 = vmatpush1.msra.mxu0 %v1159
  %1618 = vmatprep.subr.mxu0 %v1162
  %1619 = vmatpush1.msra.mxu0 %v1161
  %1620 = vmatprep.subr.mxu0 %v1164
  %1621 = vmatpush1.msra.mxu0 %v1163
  %1622 = vmatprep.subr.mxu0 %v1166
  %1623 = vmatpush1.msra.mxu0 %v1165
  %1624 = vmatprep.subr.mxu0 %v1168
  %1625 = vmatpush1.msra.mxu0 %v1167
  %1626 = vmatprep.subr.mxu0 %v1170
  %1627 = vmatpush1.msra.mxu0 %v1169
  %1628 = vmatprep.subr.mxu0 %v1172
  %1629 = vmatpush1.msra.mxu0 %v1171
  %1630 = vmatprep.subr.mxu0 %v1174
  %1631 = vmatpush1.msra.mxu0 %v1173
  %1632 = vmatprep.mubr.f32.mxu0 %v798
  %1633 = vmatmul.mubr.f32.gmra.mrb[0].mxu0 %v797
  %v1634 = vpop.f32.mrb[0].mxu0
  %v1635 = vadd.f32 %v1402, %v1634
  %v1636 = vpop.f32.mrb[0].mxu0
  %v1637 = vadd.f32 %v1404, %v1636
  %1638 = vmatprep.mubr.f32.mxu0 %v807
  %1639 = vmatmul.mubr.f32.gmra.mrb[0].mxu0 %v806
  %v1640 = vpop.f32.mrb[0].mxu0
  %v1641 = vadd.f32 %v1408, %v1640
  %v1642 = vpop.f32.mrb[0].mxu0
  %v1643 = vadd.f32 %v1410, %v1642
  %1644 = vmatprep.mubr.f32.mxu0 %v816
  %1645 = vmatmul.mubr.f32.gmra.mrb[0].mxu0 %v815
  %v1646 = vpop.f32.mrb[0].mxu0
  %v1647 = vadd.f32 %v1414, %v1646
  %v1648 = vpop.f32.mrb[0].mxu0
  %v1649 = vadd.f32 %v1416, %v1648
  %1650 = vmatprep.mubr.f32.mxu0 %v825
  %1651 = vmatmul.mubr.f32.gmra.mrb[0].mxu0 %v824
  %v1652 = vpop.f32.mrb[0].mxu0
  %v1653 = vadd.f32 %v1420, %v1652
  %v1654 = vpop.f32.mrb[0].mxu0
  %v1655 = vadd.f32 %v1422, %v1654
  %1656 = vmatprep.mubr.f32.mxu0 %v834
  %1657 = vmatmul.mubr.f32.gmra.mrb[0].mxu0 %v833
  %v1658 = vpop.f32.mrb[0].mxu0
  %v1659 = vadd.f32 %v1426, %v1658
  %v1660 = vpop.f32.mrb[0].mxu0
  %v1661 = vadd.f32 %v1428, %v1660
  %1662 = vmatprep.mubr.f32.mxu0 %v843
  %1663 = vmatmul.mubr.f32.gmra.mrb[0].mxu0 %v842
  %v1664 = vpop.f32.mrb[0].mxu0
  %v1665 = vadd.f32 %v1432, %v1664
  %v1666 = vpop.f32.mrb[0].mxu0
  %v1667 = vadd.f32 %v1434, %v1666
  %1668 = vmatprep.mubr.f32.mxu0 %v852
  %1669 = vmatmul.mubr.f32.gmra.mrb[0].mxu0 %v851
  %v1670 = vpop.f32.mrb[0].mxu0
  %v1671 = vadd.f32 %v1438, %v1670
  %v1672 = vpop.f32.mrb[0].mxu0
  %v1673 = vadd.f32 %v1440, %v1672
  %1674 = vmatprep.mubr.f32.mxu0 %v861
  %1675 = vmatmul.mubr.f32.gmra.mrb[0].mxu0 %v860
  %v1676 = vpop.f32.mrb[0].mxu0
  %v1677 = vadd.f32 %v1444, %v1676
  %v1678 = vpop.f32.mrb[0].mxu0
  %v1679 = vadd.f32 %v1446, %v1678
  %1680 = vmatprep.mubr.f32.mxu0 %v870
  %1681 = vmatmul.mubr.f32.gmra.mrb[0].mxu0 %v869
  %v1682 = vpop.f32.mrb[0].mxu0
  %v1683 = vadd.f32 %v1450, %v1682
  %v1684 = vpop.f32.mrb[0].mxu0
  %v1685 = vadd.f32 %v1452, %v1684
  %1686 = vmatprep.mubr.f32.mxu0 %v879
  %1687 = vmatmul.mubr.f32.gmra.mrb[0].mxu0 %v878
  %v1688 = vpop.f32.mrb[0].mxu0
  %v1689 = vadd.f32 %v1456, %v1688
  %v1690 = vpop.f32.mrb[0].mxu0
  %v1691 = vadd.f32 %v1458, %v1690
  %1692 = vmatprep.mubr.f32.mxu0 %v888
  %1693 = vmatmul.mubr.f32.gmra.mrb[0].mxu0 %v887
  %v1694 = vpop.f32.mrb[0].mxu0
  %v1695 = vadd.f32 %v1462, %v1694
  %v1696 = vpop.f32.mrb[0].mxu0
  %v1697 = vadd.f32 %v1464, %v1696
  %1698 = vmatprep.mubr.f32.mxu0 %v897
  %1699 = vmatmul.mubr.f32.gmra.mrb[0].mxu0 %v896
  %v1700 = vpop.f32.mrb[0].mxu0
  %v1701 = vadd.f32 %v1468, %v1700
  %v1702 = vpop.f32.mrb[0].mxu0
  %v1703 = vadd.f32 %v1470, %v1702
  %1704 = vmatprep.mubr.f32.mxu0 %v906
  %1705 = vmatmul.mubr.f32.gmra.mrb[0].mxu0 %v905
  %v1706 = vpop.f32.mrb[0].mxu0
  %v1707 = vadd.f32 %v1474, %v1706
  %v1708 = vpop.f32.mrb[0].mxu0
  %v1709 = vadd.f32 %v1476, %v1708
  %1710 = vmatprep.mubr.f32.mxu0 %v915
  %1711 = vmatmul.mubr.f32.gmra.mrb[0].mxu0 %v914
  %v1712 = vpop.f32.mrb[0].mxu0
  %v1713 = vadd.f32 %v1480, %v1712
  %v1714 = vpop.f32.mrb[0].mxu0
  %v1715 = vadd.f32 %v1482, %v1714
  %1716 = vmatprep.mubr.f32.mxu0 %v924
  %1717 = vmatmul.mubr.f32.gmra.mrb[0].mxu0 %v923
  %v1718 = vpop.f32.mrb[0].mxu0
  %v1719 = vadd.f32 %v1486, %v1718
  %v1720 = vpop.f32.mrb[0].mxu0
  %v1721 = vadd.f32 %v1488, %v1720
  %1722 = vmatprep.mubr.f32.mxu0 %v933
  %1723 = vmatmul.mubr.f32.gmra.mrb[0].mxu0 %v932
  %v1724 = vpop.f32.mrb[0].mxu0
  %v1725 = vadd.f32 %v1492, %v1724
  %v1726 = vpop.f32.mrb[0].mxu0
  %v1727 = vadd.f32 %v1494, %v1726
  %1728 = vmatprep.mubr.f32.mxu0 %v942
  %1729 = vmatmul.mubr.f32.gmra.mrb[0].mxu0 %v941
  %v1730 = vpop.f32.mrb[0].mxu0
  %v1731 = vadd.f32 %v1498, %v1730
  %v1732 = vpop.f32.mrb[0].mxu0
  %v1733 = vadd.f32 %v1500, %v1732
  %1734 = vmatprep.mubr.f32.mxu0 %v951
  %1735 = vmatmul.mubr.f32.gmra.mrb[0].mxu0 %v950
  %v1736 = vpop.f32.mrb[0].mxu0
  %v1737 = vadd.f32 %v1504, %v1736
  %v1738 = vpop.f32.mrb[0].mxu0
  %v1739 = vadd.f32 %v1506, %v1738
  %1740 = vmatprep.mubr.f32.mxu0 %v960
  %1741 = vmatmul.mubr.f32.gmra.mrb[0].mxu0 %v959
  %v1742 = vpop.f32.mrb[0].mxu0
  %v1743 = vadd.f32 %v1510, %v1742
  %v1744 = vpop.f32.mrb[0].mxu0
  %v1745 = vadd.f32 %v1512, %v1744
  %1746 = vmatprep.mubr.f32.mxu0 %v969
  %1747 = vmatmul.mubr.f32.gmra.mrb[0].mxu0 %v968
  %v1748 = vpop.f32.mrb[0].mxu0
  %v1749 = vadd.f32 %v1516, %v1748
  %v1750 = vpop.f32.mrb[0].mxu0
  %v1751 = vadd.f32 %v1518, %v1750
  %1752 = vmatprep.mubr.f32.mxu0 %v978
  %1753 = vmatmul.mubr.f32.gmra.mrb[0].mxu0 %v977
  %v1754 = vpop.f32.mrb[0].mxu0
  %v1755 = vadd.f32 %v1522, %v1754
  %v1756 = vpop.f32.mrb[0].mxu0
  %v1757 = vadd.f32 %v1524, %v1756
  %1758 = vmatprep.mubr.f32.mxu0 %v987
  %1759 = vmatmul.mubr.f32.gmra.mrb[0].mxu0 %v986
  %v1760 = vpop.f32.mrb[0].mxu0
  %v1761 = vadd.f32 %v1528, %v1760
  %v1762 = vpop.f32.mrb[0].mxu0
  %v1763 = vadd.f32 %v1530, %v1762
  %1764 = vmatprep.mubr.f32.mxu0 %v996
  %1765 = vmatmul.mubr.f32.gmra.mrb[0].mxu0 %v995
  %v1766 = vpop.f32.mrb[0].mxu0
  %v1767 = vadd.f32 %v1534, %v1766
  %v1768 = vpop.f32.mrb[0].mxu0
  %v1769 = vadd.f32 %v1536, %v1768
  %1770 = vmatprep.mubr.f32.mxu0 %v1005
  %1771 = vmatmul.mubr.f32.gmra.mrb[0].mxu0 %v1004
  %v1772 = vpop.f32.mrb[0].mxu0
  %v1773 = vadd.f32 %v1540, %v1772
  %v1774 = vpop.f32.mrb[0].mxu0
  %v1775 = vadd.f32 %v1542, %v1774
  %1776 = vmatprep.mubr.f32.mxu0 %v1014
  %1777 = vmatmul.mubr.f32.gmra.mrb[0].mxu0 %v1013
  %v1778 = vpop.f32.mrb[0].mxu0
  %v1779 = vadd.f32 %v1546, %v1778
  %v1780 = vpop.f32.mrb[0].mxu0
  %v1781 = vadd.f32 %v1548, %v1780
  %1782 = vmatprep.mubr.f32.mxu0 %v1023
  %1783 = vmatmul.mubr.f32.gmra.mrb[0].mxu0 %v1022
  %v1784 = vpop.f32.mrb[0].mxu0
  %v1785 = vadd.f32 %v1552, %v1784
  %v1786 = vpop.f32.mrb[0].mxu0
  %v1787 = vadd.f32 %v1554, %v1786
  %1788 = vmatprep.mubr.f32.mxu0 %v1032
  %1789 = vmatmul.mubr.f32.gmra.mrb[0].mxu0 %v1031
  %v1790 = vpop.f32.mrb[0].mxu0
  %v1791 = vadd.f32 %v1558, %v1790
  %v1792 = vpop.f32.mrb[0].mxu0
  %v1793 = vadd.f32 %v1560, %v1792
  %1794 = vmatprep.mubr.f32.mxu0 %v1041
  %1795 = vmatmul.mubr.f32.gmra.mrb[0].mxu0 %v1040
  %v1796 = vpop.f32.mrb[0].mxu0
  %v1797 = vadd.f32 %v1564, %v1796
  %v1798 = vpop.f32.mrb[0].mxu0
  %v1799 = vadd.f32 %v1566, %v1798
  %1800 = vdwg.mxu0
  %1801 = vmatprep.subr.mxu0 %v1176
  %1802 = vmatpush1.msra.mxu0 %v1175
  %1803 = vmatprep.subr.mxu0 %v1178
  %1804 = vmatpush1.msra.mxu0 %v1177
  %1805 = vmatprep.subr.mxu0 %v1180
  %1806 = vmatpush1.msra.mxu0 %v1179
  %1807 = vmatprep.subr.mxu0 %v1182
  %1808 = vmatpush1.msra.mxu0 %v1181
  %1809 = vmatprep.subr.mxu0 %v1184
  %1810 = vmatpush1.msra.mxu0 %v1183
  %1811 = vmatprep.subr.mxu0 %v1186
  %1812 = vmatpush1.msra.mxu0 %v1185
  %1813 = vmatprep.subr.mxu0 %v1188
  %1814 = vmatpush1.msra.mxu0 %v1187
  %1815 = vmatprep.subr.mxu0 %v1190
  %1816 = vmatpush1.msra.mxu0 %v1189
  %1817 = vmatprep.subr.mxu0 %v1192
  %1818 = vmatpush1.msra.mxu0 %v1191
  %1819 = vmatprep.subr.mxu0 %v1194
  %1820 = vmatpush1.msra.mxu0 %v1193
  %1821 = vmatprep.subr.mxu0 %v1196
  %1822 = vmatpush1.msra.mxu0 %v1195
  %1823 = vmatprep.subr.mxu0 %v1198
  %1824 = vmatpush1.msra.mxu0 %v1197
  %1825 = vmatprep.subr.mxu0 %v1200
  %1826 = vmatpush1.msra.mxu0 %v1199
  %1827 = vmatprep.subr.mxu0 %v1202
  %1828 = vmatpush1.msra.mxu0 %v1201
  %1829 = vmatprep.subr.mxu0 %v1204
  %1830 = vmatpush1.msra.mxu0 %v1203
  %1831 = vmatprep.subr.mxu0 %v1206
  %1832 = vmatpush1.msra.mxu0 %v1205
  %1833 = vmatprep.subr.mxu0 %v1208
  %1834 = vmatpush1.msra.mxu0 %v1207
  %1835 = vmatprep.subr.mxu0 %v1210
  %1836 = vmatpush1.msra.mxu0 %v1209
  %1837 = vmatprep.subr.mxu0 %v1212
  %1838 = vmatpush1.msra.mxu0 %v1211
  %1839 = vmatprep.subr.mxu0 %v1214
  %1840 = vmatpush1.msra.mxu0 %v1213
  %1841 = vmatprep.subr.mxu0 %v1216
  %1842 = vmatpush1.msra.mxu0 %v1215
  %1843 = vmatprep.subr.mxu0 %v1218
  %1844 = vmatpush1.msra.mxu0 %v1217
  %1845 = vmatprep.subr.mxu0 %v1220
  %1846 = vmatpush1.msra.mxu0 %v1219
  %1847 = vmatprep.subr.mxu0 %v1222
  %1848 = vmatpush1.msra.mxu0 %v1221
  %1849 = vmatprep.subr.mxu0 %v1224
  %1850 = vmatpush1.msra.mxu0 %v1223
  %1851 = vmatprep.subr.mxu0 %v1226
  %1852 = vmatpush1.msra.mxu0 %v1225
  %1853 = vmatprep.subr.mxu0 %v1228
  %1854 = vmatpush1.msra.mxu0 %v1227
  %1855 = vmatprep.subr.mxu0 %v1230
  %1856 = vmatpush1.msra.mxu0 %v1229
  %1857 = vmatprep.subr.mxu0 %v1232
  %1858 = vmatpush1.msra.mxu0 %v1231
  %1859 = vmatprep.subr.mxu0 %v1234
  %1860 = vmatpush1.msra.mxu0 %v1233
  %1861 = vmatprep.subr.mxu0 %v1236
  %1862 = vmatpush1.msra.mxu0 %v1235
  %1863 = vmatprep.subr.mxu0 %v1238
  %1864 = vmatpush1.msra.mxu0 %v1237
  %1865 = vmatprep.mubr.f32.mxu0 %v800
  %1866 = vmatmul.mubr.f32.gmra.mrb[0].mxu0 %v799
  %v1867 = vpop.f32.mrb[0].mxu0
  %v1868 = vadd.f32 %v1635, %v1867
  %v1869 = vpop.f32.mrb[0].mxu0
  %v1870 = vadd.f32 %v1637, %v1869
  %1871 = vmatprep.mubr.f32.mxu0 %v809
  %1872 = vmatmul.mubr.f32.gmra.mrb[0].mxu0 %v808
  %v1873 = vpop.f32.mrb[0].mxu0
  %v1874 = vadd.f32 %v1641, %v1873
  %v1875 = vpop.f32.mrb[0].mxu0
  %v1876 = vadd.f32 %v1643, %v1875
  %1877 = vmatprep.mubr.f32.mxu0 %v818
  %1878 = vmatmul.mubr.f32.gmra.mrb[0].mxu0 %v817
  %v1879 = vpop.f32.mrb[0].mxu0
  %v1880 = vadd.f32 %v1647, %v1879
  %v1881 = vpop.f32.mrb[0].mxu0
  %v1882 = vadd.f32 %v1649, %v1881
  %1883 = vmatprep.mubr.f32.mxu0 %v827
  %1884 = vmatmul.mubr.f32.gmra.mrb[0].mxu0 %v826
  %v1885 = vpop.f32.mrb[0].mxu0
  %v1886 = vadd.f32 %v1653, %v1885
  %v1887 = vpop.f32.mrb[0].mxu0
  %v1888 = vadd.f32 %v1655, %v1887
  %1889 = vmatprep.mubr.f32.mxu0 %v836
  %1890 = vmatmul.mubr.f32.gmra.mrb[0].mxu0 %v835
  %v1891 = vpop.f32.mrb[0].mxu0
  %v1892 = vadd.f32 %v1659, %v1891
  %v1893 = vpop.f32.mrb[0].mxu0
  %v1894 = vadd.f32 %v1661, %v1893
  %1895 = vmatprep.mubr.f32.mxu0 %v845
  %1896 = vmatmul.mubr.f32.gmra.mrb[0].mxu0 %v844
  %v1897 = vpop.f32.mrb[0].mxu0
  %v1898 = vadd.f32 %v1665, %v1897
  %v1899 = vpop.f32.mrb[0].mxu0
  %v1900 = vadd.f32 %v1667, %v1899
  %1901 = vmatprep.mubr.f32.mxu0 %v854
  %1902 = vmatmul.mubr.f32.gmra.mrb[0].mxu0 %v853
  %v1903 = vpop.f32.mrb[0].mxu0
  %v1904 = vadd.f32 %v1671, %v1903
  %v1905 = vpop.f32.mrb[0].mxu0
  %v1906 = vadd.f32 %v1673, %v1905
  %1907 = vmatprep.mubr.f32.mxu0 %v863
  %1908 = vmatmul.mubr.f32.gmra.mrb[0].mxu0 %v862
  %v1909 = vpop.f32.mrb[0].mxu0
  %v1910 = vadd.f32 %v1677, %v1909
  %v1911 = vpop.f32.mrb[0].mxu0
  %v1912 = vadd.f32 %v1679, %v1911
  %1913 = vmatprep.mubr.f32.mxu0 %v872
  %1914 = vmatmul.mubr.f32.gmra.mrb[0].mxu0 %v871
  %v1915 = vpop.f32.mrb[0].mxu0
  %v1916 = vadd.f32 %v1683, %v1915
  %v1917 = vpop.f32.mrb[0].mxu0
  %v1918 = vadd.f32 %v1685, %v1917
  %1919 = vmatprep.mubr.f32.mxu0 %v881
  %1920 = vmatmul.mubr.f32.gmra.mrb[0].mxu0 %v880
  %v1921 = vpop.f32.mrb[0].mxu0
  %v1922 = vadd.f32 %v1689, %v1921
  %v1923 = vpop.f32.mrb[0].mxu0
  %v1924 = vadd.f32 %v1691, %v1923
  %1925 = vmatprep.mubr.f32.mxu0 %v890
  %1926 = vmatmul.mubr.f32.gmra.mrb[0].mxu0 %v889
  %v1927 = vpop.f32.mrb[0].mxu0
  %v1928 = vadd.f32 %v1695, %v1927
  %v1929 = vpop.f32.mrb[0].mxu0
  %v1930 = vadd.f32 %v1697, %v1929
  %1931 = vmatprep.mubr.f32.mxu0 %v899
  %1932 = vmatmul.mubr.f32.gmra.mrb[0].mxu0 %v898
  %v1933 = vpop.f32.mrb[0].mxu0
  %v1934 = vadd.f32 %v1701, %v1933
  %v1935 = vpop.f32.mrb[0].mxu0
  %v1936 = vadd.f32 %v1703, %v1935
  %1937 = vmatprep.mubr.f32.mxu0 %v908
  %1938 = vmatmul.mubr.f32.gmra.mrb[0].mxu0 %v907
  %v1939 = vpop.f32.mrb[0].mxu0
  %v1940 = vadd.f32 %v1707, %v1939
  %v1941 = vpop.f32.mrb[0].mxu0
  %v1942 = vadd.f32 %v1709, %v1941
  %1943 = vmatprep.mubr.f32.mxu0 %v917
  %1944 = vmatmul.mubr.f32.gmra.mrb[0].mxu0 %v916
  %v1945 = vpop.f32.mrb[0].mxu0
  %v1946 = vadd.f32 %v1713, %v1945
  %v1947 = vpop.f32.mrb[0].mxu0
  %v1948 = vadd.f32 %v1715, %v1947
  %1949 = vmatprep.mubr.f32.mxu0 %v926
  %1950 = vmatmul.mubr.f32.gmra.mrb[0].mxu0 %v925
  %v1951 = vpop.f32.mrb[0].mxu0
  %v1952 = vadd.f32 %v1719, %v1951
  %v1953 = vpop.f32.mrb[0].mxu0
  %v1954 = vadd.f32 %v1721, %v1953
  %1955 = vmatprep.mubr.f32.mxu0 %v935
  %1956 = vmatmul.mubr.f32.gmra.mrb[0].mxu0 %v934
  %v1957 = vpop.f32.mrb[0].mxu0
  %v1958 = vadd.f32 %v1725, %v1957
  %v1959 = vpop.f32.mrb[0].mxu0
  %v1960 = vadd.f32 %v1727, %v1959
  %1961 = vmatprep.mubr.f32.mxu0 %v944
  %1962 = vmatmul.mubr.f32.gmra.mrb[0].mxu0 %v943
  %v1963 = vpop.f32.mrb[0].mxu0
  %v1964 = vadd.f32 %v1731, %v1963
  %v1965 = vpop.f32.mrb[0].mxu0
  %v1966 = vadd.f32 %v1733, %v1965
  %1967 = vmatprep.mubr.f32.mxu0 %v953
  %1968 = vmatmul.mubr.f32.gmra.mrb[0].mxu0 %v952
  %v1969 = vpop.f32.mrb[0].mxu0
  %v1970 = vadd.f32 %v1737, %v1969
  %v1971 = vpop.f32.mrb[0].mxu0
  %v1972 = vadd.f32 %v1739, %v1971
  %1973 = vmatprep.mubr.f32.mxu0 %v962
  %1974 = vmatmul.mubr.f32.gmra.mrb[0].mxu0 %v961
  %v1975 = vpop.f32.mrb[0].mxu0
  %v1976 = vadd.f32 %v1743, %v1975
  %v1977 = vpop.f32.mrb[0].mxu0
  %v1978 = vadd.f32 %v1745, %v1977
  %1979 = vmatprep.mubr.f32.mxu0 %v971
  %1980 = vmatmul.mubr.f32.gmra.mrb[0].mxu0 %v970
  %v1981 = vpop.f32.mrb[0].mxu0
  %v1982 = vadd.f32 %v1749, %v1981
  %v1983 = vpop.f32.mrb[0].mxu0
  %v1984 = vadd.f32 %v1751, %v1983
  %1985 = vmatprep.mubr.f32.mxu0 %v980
  %1986 = vmatmul.mubr.f32.gmra.mrb[0].mxu0 %v979
  %v1987 = vpop.f32.mrb[0].mxu0
  %v1988 = vadd.f32 %v1755, %v1987
  %v1989 = vpop.f32.mrb[0].mxu0
  %v1990 = vadd.f32 %v1757, %v1989
  %1991 = vmatprep.mubr.f32.mxu0 %v989
  %1992 = vmatmul.mubr.f32.gmra.mrb[0].mxu0 %v988
  %v1993 = vpop.f32.mrb[0].mxu0
  %v1994 = vadd.f32 %v1761, %v1993
  %v1995 = vpop.f32.mrb[0].mxu0
  %v1996 = vadd.f32 %v1763, %v1995
  %1997 = vmatprep.mubr.f32.mxu0 %v998
  %1998 = vmatmul.mubr.f32.gmra.mrb[0].mxu0 %v997
  %v1999 = vpop.f32.mrb[0].mxu0
  %v2000 = vadd.f32 %v1767, %v1999
  %v2001 = vpop.f32.mrb[0].mxu0
  %v2002 = vadd.f32 %v1769, %v2001
  %2003 = vmatprep.mubr.f32.mxu0 %v1007
  %2004 = vmatmul.mubr.f32.gmra.mrb[0].mxu0 %v1006
  %v2005 = vpop.f32.mrb[0].mxu0
  %v2006 = vadd.f32 %v1773, %v2005
  %v2007 = vpop.f32.mrb[0].mxu0
  %v2008 = vadd.f32 %v1775, %v2007
  %2009 = vmatprep.mubr.f32.mxu0 %v1016
  %2010 = vmatmul.mubr.f32.gmra.mrb[0].mxu0 %v1015
  %v2011 = vpop.f32.mrb[0].mxu0
  %v2012 = vadd.f32 %v1779, %v2011
  %v2013 = vpop.f32.mrb[0].mxu0
  %v2014 = vadd.f32 %v1781, %v2013
  %2015 = vmatprep.mubr.f32.mxu0 %v1025
  %2016 = vmatmul.mubr.f32.gmra.mrb[0].mxu0 %v1024
  %v2017 = vpop.f32.mrb[0].mxu0
  %v2018 = vadd.f32 %v1785, %v2017
  %v2019 = vpop.f32.mrb[0].mxu0
  %v2020 = vadd.f32 %v1787, %v2019
  %2021 = vmatprep.mubr.f32.mxu0 %v1034
  %2022 = vmatmul.mubr.f32.gmra.mrb[0].mxu0 %v1033
  %v2023 = vpop.f32.mrb[0].mxu0
  %v2024 = vadd.f32 %v1791, %v2023
  %v2025 = vpop.f32.mrb[0].mxu0
  %v2026 = vadd.f32 %v1793, %v2025
  %2027 = vmatprep.mubr.f32.mxu0 %v1043
  %2028 = vmatmul.mubr.f32.gmra.mrb[0].mxu0 %v1042
  %v2029 = vpop.f32.mrb[0].mxu0
  %v2030 = vadd.f32 %v1797, %v2029
  %v2031 = vpop.f32.mrb[0].mxu0
  %v2032 = vadd.f32 %v1799, %v2031
  %2033 = vdwg.mxu0
  %2034 = vmatprep.subr.mxu0 %v1240
  %2035 = vmatpush1.msra.mxu0 %v1239
  %2036 = vmatprep.subr.mxu0 %v1242
  %2037 = vmatpush1.msra.mxu0 %v1241
  %2038 = vmatprep.subr.mxu0 %v1244
  %2039 = vmatpush1.msra.mxu0 %v1243
  %2040 = vmatprep.subr.mxu0 %v1246
  %2041 = vmatpush1.msra.mxu0 %v1245
  %2042 = vmatprep.subr.mxu0 %v1248
  %2043 = vmatpush1.msra.mxu0 %v1247
  %2044 = vmatprep.subr.mxu0 %v1250
  %2045 = vmatpush1.msra.mxu0 %v1249
  %2046 = vmatprep.subr.mxu0 %v1252
  %2047 = vmatpush1.msra.mxu0 %v1251
  %2048 = vmatprep.subr.mxu0 %v1254
  %2049 = vmatpush1.msra.mxu0 %v1253
  %2050 = vmatprep.subr.mxu0 %v1256
  %2051 = vmatpush1.msra.mxu0 %v1255
  %2052 = vmatprep.subr.mxu0 %v1258
  %2053 = vmatpush1.msra.mxu0 %v1257
  %2054 = vmatprep.subr.mxu0 %v1260
  %2055 = vmatpush1.msra.mxu0 %v1259
  %2056 = vmatprep.subr.mxu0 %v1262
  %2057 = vmatpush1.msra.mxu0 %v1261
  %2058 = vmatprep.subr.mxu0 %v1264
  %2059 = vmatpush1.msra.mxu0 %v1263
  %2060 = vmatprep.subr.mxu0 %v1266
  %2061 = vmatpush1.msra.mxu0 %v1265
  %2062 = vmatprep.subr.mxu0 %v1268
  %2063 = vmatpush1.msra.mxu0 %v1267
  %2064 = vmatprep.subr.mxu0 %v1270
  %2065 = vmatpush1.msra.mxu0 %v1269
  %2066 = vmatprep.subr.mxu0 %v1272
  %2067 = vmatpush1.msra.mxu0 %v1271
  %2068 = vmatprep.subr.mxu0 %v1274
  %2069 = vmatpush1.msra.mxu0 %v1273
  %2070 = vmatprep.subr.mxu0 %v1276
  %2071 = vmatpush1.msra.mxu0 %v1275
  %2072 = vmatprep.subr.mxu0 %v1278
  %2073 = vmatpush1.msra.mxu0 %v1277
  %2074 = vmatprep.subr.mxu0 %v1280
  %2075 = vmatpush1.msra.mxu0 %v1279
  %2076 = vmatprep.subr.mxu0 %v1282
  %2077 = vmatpush1.msra.mxu0 %v1281
  %2078 = vmatprep.subr.mxu0 %v1284
  %2079 = vmatpush1.msra.mxu0 %v1283
  %2080 = vmatprep.subr.mxu0 %v1286
  %2081 = vmatpush1.msra.mxu0 %v1285
  %2082 = vmatprep.subr.mxu0 %v1288
  %2083 = vmatpush1.msra.mxu0 %v1287
  %2084 = vmatprep.subr.mxu0 %v1290
  %2085 = vmatpush1.msra.mxu0 %v1289
  %2086 = vmatprep.subr.mxu0 %v1292
  %2087 = vmatpush1.msra.mxu0 %v1291
  %2088 = vmatprep.subr.mxu0 %v1294
  %2089 = vmatpush1.msra.mxu0 %v1293
  %2090 = vmatprep.subr.mxu0 %v1296
  %2091 = vmatpush1.msra.mxu0 %v1295
  %2092 = vmatprep.subr.mxu0 %v1298
  %2093 = vmatpush1.msra.mxu0 %v1297
  %2094 = vmatprep.subr.mxu0 %v1300
  %2095 = vmatpush1.msra.mxu0 %v1299
  %2096 = vmatprep.subr.mxu0 %v1302
  %2097 = vmatpush1.msra.mxu0 %v1301
  %2098 = vmatprep.mubr.f32.mxu0 %v802
  %2099 = vmatmul.mubr.f32.gmra.mrb[0].mxu0 %v801
  %v2100 = vpop.f32.mrb[0].mxu0
  %v2101 = vadd.f32 %v1868, %v2100
  %v2102 = vpop.f32.mrb[0].mxu0
  %v2103 = vadd.f32 %v1870, %v2102
  %2104 = vmatprep.mubr.f32.mxu0 %v811
  %2105 = vmatmul.mubr.f32.gmra.mrb[0].mxu0 %v810
  %v2106 = vpop.f32.mrb[0].mxu0
  %v2107 = vadd.f32 %v1874, %v2106
  %v2108 = vpop.f32.mrb[0].mxu0
  %v2109 = vadd.f32 %v1876, %v2108
  %2110 = vmatprep.mubr.f32.mxu0 %v820
  %2111 = vmatmul.mubr.f32.gmra.mrb[0].mxu0 %v819
  %v2112 = vpop.f32.mrb[0].mxu0
  %v2113 = vadd.f32 %v1880, %v2112
  %v2114 = vpop.f32.mrb[0].mxu0
  %v2115 = vadd.f32 %v1882, %v2114
  %2116 = vmatprep.mubr.f32.mxu0 %v829
  %2117 = vmatmul.mubr.f32.gmra.mrb[0].mxu0 %v828
  %v2118 = vpop.f32.mrb[0].mxu0
  %v2119 = vadd.f32 %v1886, %v2118
  %v2120 = vpop.f32.mrb[0].mxu0
  %v2121 = vadd.f32 %v1888, %v2120
  %2122 = vmatprep.mubr.f32.mxu0 %v838
  %2123 = vmatmul.mubr.f32.gmra.mrb[0].mxu0 %v837
  %v2124 = vpop.f32.mrb[0].mxu0
  %v2125 = vadd.f32 %v1892, %v2124
  %v2126 = vpop.f32.mrb[0].mxu0
  %v2127 = vadd.f32 %v1894, %v2126
  %2128 = vmatprep.mubr.f32.mxu0 %v847
  %2129 = vmatmul.mubr.f32.gmra.mrb[0].mxu0 %v846
  %v2130 = vpop.f32.mrb[0].mxu0
  %v2131 = vadd.f32 %v1898, %v2130
  %v2132 = vpop.f32.mrb[0].mxu0
  %v2133 = vadd.f32 %v1900, %v2132
  %2134 = vmatprep.mubr.f32.mxu0 %v856
  %2135 = vmatmul.mubr.f32.gmra.mrb[0].mxu0 %v855
  %v2136 = vpop.f32.mrb[0].mxu0
  %v2137 = vadd.f32 %v1904, %v2136
  %v2138 = vpop.f32.mrb[0].mxu0
  %v2139 = vadd.f32 %v1906, %v2138
  %2140 = vmatprep.mubr.f32.mxu0 %v865
  %2141 = vmatmul.mubr.f32.gmra.mrb[0].mxu0 %v864
  %v2142 = vpop.f32.mrb[0].mxu0
  %v2143 = vadd.f32 %v1910, %v2142
  %v2144 = vpop.f32.mrb[0].mxu0
  %v2145 = vadd.f32 %v1912, %v2144
  %2146 = vmatprep.mubr.f32.mxu0 %v874
  %2147 = vmatmul.mubr.f32.gmra.mrb[0].mxu0 %v873
  %v2148 = vpop.f32.mrb[0].mxu0
  %v2149 = vadd.f32 %v1916, %v2148
  %v2150 = vpop.f32.mrb[0].mxu0
  %v2151 = vadd.f32 %v1918, %v2150
  %2152 = vmatprep.mubr.f32.mxu0 %v883
  %2153 = vmatmul.mubr.f32.gmra.mrb[0].mxu0 %v882
  %v2154 = vpop.f32.mrb[0].mxu0
  %v2155 = vadd.f32 %v1922, %v2154
  %v2156 = vpop.f32.mrb[0].mxu0
  %v2157 = vadd.f32 %v1924, %v2156
  %2158 = vmatprep.mubr.f32.mxu0 %v892
  %2159 = vmatmul.mubr.f32.gmra.mrb[0].mxu0 %v891
  %v2160 = vpop.f32.mrb[0].mxu0
  %v2161 = vadd.f32 %v1928, %v2160
  %v2162 = vpop.f32.mrb[0].mxu0
  %v2163 = vadd.f32 %v1930, %v2162
  %2164 = vmatprep.mubr.f32.mxu0 %v901
  %2165 = vmatmul.mubr.f32.gmra.mrb[0].mxu0 %v900
  %v2166 = vpop.f32.mrb[0].mxu0
  %v2167 = vadd.f32 %v1934, %v2166
  %v2168 = vpop.f32.mrb[0].mxu0
  %v2169 = vadd.f32 %v1936, %v2168
  %2170 = vmatprep.mubr.f32.mxu0 %v910
  %2171 = vmatmul.mubr.f32.gmra.mrb[0].mxu0 %v909
  %v2172 = vpop.f32.mrb[0].mxu0
  %v2173 = vadd.f32 %v1940, %v2172
  %v2174 = vpop.f32.mrb[0].mxu0
  %v2175 = vadd.f32 %v1942, %v2174
  %2176 = vmatprep.mubr.f32.mxu0 %v919
  %2177 = vmatmul.mubr.f32.gmra.mrb[0].mxu0 %v918
  %v2178 = vpop.f32.mrb[0].mxu0
  %v2179 = vadd.f32 %v1946, %v2178
  %v2180 = vpop.f32.mrb[0].mxu0
  %v2181 = vadd.f32 %v1948, %v2180
  %2182 = vmatprep.mubr.f32.mxu0 %v928
  %2183 = vmatmul.mubr.f32.gmra.mrb[0].mxu0 %v927
  %v2184 = vpop.f32.mrb[0].mxu0
  %v2185 = vadd.f32 %v1952, %v2184
  %v2186 = vpop.f32.mrb[0].mxu0
  %v2187 = vadd.f32 %v1954, %v2186
  %2188 = vmatprep.mubr.f32.mxu0 %v937
  %2189 = vmatmul.mubr.f32.gmra.mrb[0].mxu0 %v936
  %v2190 = vpop.f32.mrb[0].mxu0
  %v2191 = vadd.f32 %v1958, %v2190
  %v2192 = vpop.f32.mrb[0].mxu0
  %v2193 = vadd.f32 %v1960, %v2192
  %2194 = vmatprep.mubr.f32.mxu0 %v946
  %2195 = vmatmul.mubr.f32.gmra.mrb[0].mxu0 %v945
  %v2196 = vpop.f32.mrb[0].mxu0
  %v2197 = vadd.f32 %v1964, %v2196
  %v2198 = vpop.f32.mrb[0].mxu0
  %v2199 = vadd.f32 %v1966, %v2198
  %2200 = vmatprep.mubr.f32.mxu0 %v955
  %2201 = vmatmul.mubr.f32.gmra.mrb[0].mxu0 %v954
  %v2202 = vpop.f32.mrb[0].mxu0
  %v2203 = vadd.f32 %v1970, %v2202
  %v2204 = vpop.f32.mrb[0].mxu0
  %v2205 = vadd.f32 %v1972, %v2204
  %2206 = vmatprep.mubr.f32.mxu0 %v964
  %2207 = vmatmul.mubr.f32.gmra.mrb[0].mxu0 %v963
  %v2208 = vpop.f32.mrb[0].mxu0
  %v2209 = vadd.f32 %v1976, %v2208
  %v2210 = vpop.f32.mrb[0].mxu0
  %v2211 = vadd.f32 %v1978, %v2210
  %2212 = vmatprep.mubr.f32.mxu0 %v973
  %2213 = vmatmul.mubr.f32.gmra.mrb[0].mxu0 %v972
  %v2214 = vpop.f32.mrb[0].mxu0
  %v2215 = vadd.f32 %v1982, %v2214
  %v2216 = vpop.f32.mrb[0].mxu0
  %v2217 = vadd.f32 %v1984, %v2216
  %2218 = vmatprep.mubr.f32.mxu0 %v982
  %2219 = vmatmul.mubr.f32.gmra.mrb[0].mxu0 %v981
  %v2220 = vpop.f32.mrb[0].mxu0
  %v2221 = vadd.f32 %v1988, %v2220
  %v2222 = vpop.f32.mrb[0].mxu0
  %v2223 = vadd.f32 %v1990, %v2222
  %2224 = vmatprep.mubr.f32.mxu0 %v991
  %2225 = vmatmul.mubr.f32.gmra.mrb[0].mxu0 %v990
  %v2226 = vpop.f32.mrb[0].mxu0
  %v2227 = vadd.f32 %v1994, %v2226
  %v2228 = vpop.f32.mrb[0].mxu0
  %v2229 = vadd.f32 %v1996, %v2228
  %2230 = vmatprep.mubr.f32.mxu0 %v1000
  %2231 = vmatmul.mubr.f32.gmra.mrb[0].mxu0 %v999
  %v2232 = vpop.f32.mrb[0].mxu0
  %v2233 = vadd.f32 %v2000, %v2232
  %v2234 = vpop.f32.mrb[0].mxu0
  %v2235 = vadd.f32 %v2002, %v2234
  %2236 = vmatprep.mubr.f32.mxu0 %v1009
  %2237 = vmatmul.mubr.f32.gmra.mrb[0].mxu0 %v1008
  %v2238 = vpop.f32.mrb[0].mxu0
  %v2239 = vadd.f32 %v2006, %v2238
  %v2240 = vpop.f32.mrb[0].mxu0
  %v2241 = vadd.f32 %v2008, %v2240
  %2242 = vmatprep.mubr.f32.mxu0 %v1018
  %2243 = vmatmul.mubr.f32.gmra.mrb[0].mxu0 %v1017
  %v2244 = vpop.f32.mrb[0].mxu0
  %v2245 = vadd.f32 %v2012, %v2244
  %v2246 = vpop.f32.mrb[0].mxu0
  %v2247 = vadd.f32 %v2014, %v2246
  %2248 = vmatprep.mubr.f32.mxu0 %v1027
  %2249 = vmatmul.mubr.f32.gmra.mrb[0].mxu0 %v1026
  %v2250 = vpop.f32.mrb[0].mxu0
  %v2251 = vadd.f32 %v2018, %v2250
  %v2252 = vpop.f32.mrb[0].mxu0
  %v2253 = vadd.f32 %v2020, %v2252
  %2254 = vmatprep.mubr.f32.mxu0 %v1036
  %2255 = vmatmul.mubr.f32.gmra.mrb[0].mxu0 %v1035
  %v2256 = vpop.f32.mrb[0].mxu0
  %v2257 = vadd.f32 %v2024, %v2256
  %v2258 = vpop.f32.mrb[0].mxu0
  %v2259 = vadd.f32 %v2026, %v2258
  %2260 = vmatprep.mubr.f32.mxu0 %v1045
  %2261 = vmatmul.mubr.f32.gmra.mrb[0].mxu0 %v1044
  %v2262 = vpop.f32.mrb[0].mxu0
  %v2263 = vadd.f32 %v2030, %v2262
  %v2264 = vpop.f32.mrb[0].mxu0
  %v2265 = vadd.f32 %v2032, %v2264
  %2266 = vdwg.mxu0
  %2267 = vmatprep.subr.mxu0 %v1304
  %2268 = vmatpush1.msra.mxu0 %v1303
  %2269 = vmatprep.subr.mxu0 %v1306
  %2270 = vmatpush1.msra.mxu0 %v1305
  %2271 = vmatprep.subr.mxu0 %v1308
  %2272 = vmatpush1.msra.mxu0 %v1307
  %2273 = vmatprep.subr.mxu0 %v1310
  %2274 = vmatpush1.msra.mxu0 %v1309
  %2275 = vmatprep.subr.mxu0 %v1312
  %2276 = vmatpush1.msra.mxu0 %v1311
  %2277 = vmatprep.subr.mxu0 %v1314
  %2278 = vmatpush1.msra.mxu0 %v1313
  %2279 = vmatprep.subr.mxu0 %v1316
  %2280 = vmatpush1.msra.mxu0 %v1315
  %2281 = vmatprep.subr.mxu0 %v1318
  %2282 = vmatpush1.msra.mxu0 %v1317
  %2283 = vmatprep.subr.mxu0 %v1320
  %2284 = vmatpush1.msra.mxu0 %v1319
  %2285 = vmatprep.subr.mxu0 %v1322
  %2286 = vmatpush1.msra.mxu0 %v1321
  %2287 = vmatprep.subr.mxu0 %v1324
  %2288 = vmatpush1.msra.mxu0 %v1323
  %2289 = vmatprep.subr.mxu0 %v1326
  %2290 = vmatpush1.msra.mxu0 %v1325
  %2291 = vmatprep.subr.mxu0 %v1328
  %2292 = vmatpush1.msra.mxu0 %v1327
  %2293 = vmatprep.subr.mxu0 %v1330
  %2294 = vmatpush1.msra.mxu0 %v1329
  %2295 = vmatprep.subr.mxu0 %v1332
  %2296 = vmatpush1.msra.mxu0 %v1331
  %2297 = vmatprep.subr.mxu0 %v1334
  %2298 = vmatpush1.msra.mxu0 %v1333
  %2299 = vmatprep.subr.mxu0 0.0
  %2300 = vmatpush1.msra.mxu0 0.0
  %2301 = vmatprep.subr.mxu0 0.0
  %2302 = vmatpush1.msra.mxu0 0.0
  %2303 = vmatprep.subr.mxu0 0.0
  %2304 = vmatpush1.msra.mxu0 0.0
  %2305 = vmatprep.subr.mxu0 0.0
  %2306 = vmatpush1.msra.mxu0 0.0
  %2307 = vmatprep.subr.mxu0 0.0
  %2308 = vmatpush1.msra.mxu0 0.0
  %2309 = vmatprep.subr.mxu0 0.0
  %2310 = vmatpush1.msra.mxu0 0.0
  %2311 = vmatprep.subr.mxu0 0.0
  %2312 = vmatpush1.msra.mxu0 0.0
  %2313 = vmatprep.subr.mxu0 0.0
  %2314 = vmatpush1.msra.mxu0 0.0
  %2315 = vmatprep.subr.mxu0 0.0
  %2316 = vmatpush1.msra.mxu0 0.0
  %2317 = vmatprep.subr.mxu0 0.0
  %2318 = vmatpush1.msra.mxu0 0.0
  %2319 = vmatprep.subr.mxu0 0.0
  %2320 = vmatpush1.msra.mxu0 0.0
  %2321 = vmatprep.subr.mxu0 0.0
  %2322 = vmatpush1.msra.mxu0 0.0
  %2323 = vmatprep.subr.mxu0 0.0
  %2324 = vmatpush1.msra.mxu0 0.0
  %2325 = vmatprep.subr.mxu0 0.0
  %2326 = vmatpush1.msra.mxu0 0.0
  %2327 = vmatprep.subr.mxu0 0.0
  %2328 = vmatpush1.msra.mxu0 0.0
  %2329 = vmatprep.subr.mxu0 0.0
  %2330 = vmatpush1.msra.mxu0 0.0
  %2331 = vmatprep.mubr.f32.mxu0 0.0
  %2332 = vmatmul.mubr.f32.gmra.mrb[0].mxu0 %v803
  %v2333 = vpop.f32.mrb[0].mxu0
  %v2334 = vadd.f32 %v2101, %v2333
  %v2335 = vpop.f32.mrb[0].mxu0
  %v2336 = vadd.f32 %v2103, %v2335
  %2337 = vmatprep.mubr.f32.mxu0 0.0
  %2338 = vmatmul.mubr.f32.gmra.mrb[0].mxu0 %v812
  %v2339 = vpop.f32.mrb[0].mxu0
  %v2340 = vadd.f32 %v2107, %v2339
  %v2341 = vpop.f32.mrb[0].mxu0
  %v2342 = vadd.f32 %v2109, %v2341
  %2343 = vmatprep.mubr.f32.mxu0 0.0
  %2344 = vmatmul.mubr.f32.gmra.mrb[0].mxu0 %v821
  %v2345 = vpop.f32.mrb[0].mxu0
  %v2346 = vadd.f32 %v2113, %v2345
  %v2347 = vpop.f32.mrb[0].mxu0
  %v2348 = vadd.f32 %v2115, %v2347
  %2349 = vmatprep.mubr.f32.mxu0 0.0
  %2350 = vmatmul.mubr.f32.gmra.mrb[0].mxu0 %v830
  %v2351 = vpop.f32.mrb[0].mxu0
  %v2352 = vadd.f32 %v2119, %v2351
  %v2353 = vpop.f32.mrb[0].mxu0
  %v2354 = vadd.f32 %v2121, %v2353
  %2355 = vmatprep.mubr.f32.mxu0 0.0
  %2356 = vmatmul.mubr.f32.gmra.mrb[0].mxu0 %v839
  %v2357 = vpop.f32.mrb[0].mxu0
  %v2358 = vadd.f32 %v2125, %v2357
  %v2359 = vpop.f32.mrb[0].mxu0
  %v2360 = vadd.f32 %v2127, %v2359
  %2361 = vmatprep.mubr.f32.mxu0 0.0
  %2362 = vmatmul.mubr.f32.gmra.mrb[0].mxu0 %v848
  %v2363 = vpop.f32.mrb[0].mxu0
  %v2364 = vadd.f32 %v2131, %v2363
  %v2365 = vpop.f32.mrb[0].mxu0
  %v2366 = vadd.f32 %v2133, %v2365
  %2367 = vmatprep.mubr.f32.mxu0 0.0
  %2368 = vmatmul.mubr.f32.gmra.mrb[0].mxu0 %v857
  %v2369 = vpop.f32.mrb[0].mxu0
  %v2370 = vadd.f32 %v2137, %v2369
  %v2371 = vpop.f32.mrb[0].mxu0
  %v2372 = vadd.f32 %v2139, %v2371
  %2373 = vmatprep.mubr.f32.mxu0 0.0
  %2374 = vmatmul.mubr.f32.gmra.mrb[0].mxu0 %v866
  %v2375 = vpop.f32.mrb[0].mxu0
  %v2376 = vadd.f32 %v2143, %v2375
  %v2377 = vpop.f32.mrb[0].mxu0
  %v2378 = vadd.f32 %v2145, %v2377
  %2379 = vmatprep.mubr.f32.mxu0 0.0
  %2380 = vmatmul.mubr.f32.gmra.mrb[0].mxu0 %v875
  %v2381 = vpop.f32.mrb[0].mxu0
  %v2382 = vadd.f32 %v2149, %v2381
  %v2383 = vpop.f32.mrb[0].mxu0
  %v2384 = vadd.f32 %v2151, %v2383
  %2385 = vmatprep.mubr.f32.mxu0 0.0
  %2386 = vmatmul.mubr.f32.gmra.mrb[0].mxu0 %v884
  %v2387 = vpop.f32.mrb[0].mxu0
  %v2388 = vadd.f32 %v2155, %v2387
  %v2389 = vpop.f32.mrb[0].mxu0
  %v2390 = vadd.f32 %v2157, %v2389
  %2391 = vmatprep.mubr.f32.mxu0 0.0
  %2392 = vmatmul.mubr.f32.gmra.mrb[0].mxu0 %v893
  %v2393 = vpop.f32.mrb[0].mxu0
  %v2394 = vadd.f32 %v2161, %v2393
  %v2395 = vpop.f32.mrb[0].mxu0
  %v2396 = vadd.f32 %v2163, %v2395
  %2397 = vmatprep.mubr.f32.mxu0 0.0
  %2398 = vmatmul.mubr.f32.gmra.mrb[0].mxu0 %v902
  %v2399 = vpop.f32.mrb[0].mxu0
  %v2400 = vadd.f32 %v2167, %v2399
  %v2401 = vpop.f32.mrb[0].mxu0
  %v2402 = vadd.f32 %v2169, %v2401
  %2403 = vmatprep.mubr.f32.mxu0 0.0
  %2404 = vmatmul.mubr.f32.gmra.mrb[0].mxu0 %v911
  %v2405 = vpop.f32.mrb[0].mxu0
  %v2406 = vadd.f32 %v2173, %v2405
  %v2407 = vpop.f32.mrb[0].mxu0
  %v2408 = vadd.f32 %v2175, %v2407
  %2409 = vmatprep.mubr.f32.mxu0 0.0
  %2410 = vmatmul.mubr.f32.gmra.mrb[0].mxu0 %v920
  %v2411 = vpop.f32.mrb[0].mxu0
  %v2412 = vadd.f32 %v2179, %v2411
  %v2413 = vpop.f32.mrb[0].mxu0
  %v2414 = vadd.f32 %v2181, %v2413
  %2415 = vmatprep.mubr.f32.mxu0 0.0
  %2416 = vmatmul.mubr.f32.gmra.mrb[0].mxu0 %v929
  %v2417 = vpop.f32.mrb[0].mxu0
  %v2418 = vadd.f32 %v2185, %v2417
  %v2419 = vpop.f32.mrb[0].mxu0
  %v2420 = vadd.f32 %v2187, %v2419
  %2421 = vmatprep.mubr.f32.mxu0 0.0
  %2422 = vmatmul.mubr.f32.gmra.mrb[0].mxu0 %v938
  %v2423 = vpop.f32.mrb[0].mxu0
  %v2424 = vadd.f32 %v2191, %v2423
  %v2425 = vpop.f32.mrb[0].mxu0
  %v2426 = vadd.f32 %v2193, %v2425
  %2427 = vmatprep.mubr.f32.mxu0 0.0
  %2428 = vmatmul.mubr.f32.gmra.mrb[0].mxu0 %v947
  %v2429 = vpop.f32.mrb[0].mxu0
  %v2430 = vadd.f32 %v2197, %v2429
  %v2431 = vpop.f32.mrb[0].mxu0
  %v2432 = vadd.f32 %v2199, %v2431
  %2433 = vmatprep.mubr.f32.mxu0 0.0
  %2434 = vmatmul.mubr.f32.gmra.mrb[0].mxu0 %v956
  %v2435 = vpop.f32.mrb[0].mxu0
  %v2436 = vadd.f32 %v2203, %v2435
  %v2437 = vpop.f32.mrb[0].mxu0
  %v2438 = vadd.f32 %v2205, %v2437
  %2439 = vmatprep.mubr.f32.mxu0 0.0
  %2440 = vmatmul.mubr.f32.gmra.mrb[0].mxu0 %v965
  %v2441 = vpop.f32.mrb[0].mxu0
  %v2442 = vadd.f32 %v2209, %v2441
  %v2443 = vpop.f32.mrb[0].mxu0
  %v2444 = vadd.f32 %v2211, %v2443
  %2445 = vmatprep.mubr.f32.mxu0 0.0
  %2446 = vmatmul.mubr.f32.gmra.mrb[0].mxu0 %v974
  %v2447 = vpop.f32.mrb[0].mxu0
  %v2448 = vadd.f32 %v2215, %v2447
  %v2449 = vpop.f32.mrb[0].mxu0
  %v2450 = vadd.f32 %v2217, %v2449
  %2451 = vmatprep.mubr.f32.mxu0 0.0
  %2452 = vmatmul.mubr.f32.gmra.mrb[0].mxu0 %v983
  %v2453 = vpop.f32.mrb[0].mxu0
  %v2454 = vadd.f32 %v2221, %v2453
  %v2455 = vpop.f32.mrb[0].mxu0
  %v2456 = vadd.f32 %v2223, %v2455
  %2457 = vmatprep.mubr.f32.mxu0 0.0
  %2458 = vmatmul.mubr.f32.gmra.mrb[0].mxu0 %v992
  %v2459 = vpop.f32.mrb[0].mxu0
  %v2460 = vadd.f32 %v2227, %v2459
  %v2461 = vpop.f32.mrb[0].mxu0
  %v2462 = vadd.f32 %v2229, %v2461
  %2463 = vmatprep.mubr.f32.mxu0 0.0
  %2464 = vmatmul.mubr.f32.gmra.mrb[0].mxu0 %v1001
  %v2465 = vpop.f32.mrb[0].mxu0
  %v2466 = vadd.f32 %v2233, %v2465
  %v2467 = vpop.f32.mrb[0].mxu0
  %v2468 = vadd.f32 %v2235, %v2467
  %2469 = vmatprep.mubr.f32.mxu0 0.0
  %2470 = vmatmul.mubr.f32.gmra.mrb[0].mxu0 %v1010
  %v2471 = vpop.f32.mrb[0].mxu0
  %v2472 = vadd.f32 %v2239, %v2471
  %v2473 = vpop.f32.mrb[0].mxu0
  %v2474 = vadd.f32 %v2241, %v2473
  %2475 = vmatprep.mubr.f32.mxu0 0.0
  %2476 = vmatmul.mubr.f32.gmra.mrb[0].mxu0 %v1019
  %v2477 = vpop.f32.mrb[0].mxu0
  %v2478 = vadd.f32 %v2245, %v2477
  %v2479 = vpop.f32.mrb[0].mxu0
  %v2480 = vadd.f32 %v2247, %v2479
  %2481 = vmatprep.mubr.f32.mxu0 0.0
  %2482 = vmatmul.mubr.f32.gmra.mrb[0].mxu0 %v1028
  %v2483 = vpop.f32.mrb[0].mxu0
  %v2484 = vadd.f32 %v2251, %v2483
  %v2485 = vpop.f32.mrb[0].mxu0
  %v2486 = vadd.f32 %v2253, %v2485
  %2487 = vmatprep.mubr.f32.mxu0 0.0
  %2488 = vmatmul.mubr.f32.gmra.mrb[0].mxu0 %v1037
  %v2489 = vpop.f32.mrb[0].mxu0
  %v2490 = vadd.f32 %v2257, %v2489
  %v2491 = vpop.f32.mrb[0].mxu0
  %v2492 = vadd.f32 %v2259, %v2491
  %2493 = vmatprep.mubr.f32.mxu0 0.0
  %2494 = vmatmul.mubr.f32.gmra.mrb[0].mxu0 %v1046
  %v2495 = vpop.f32.mrb[0].mxu0
  %v2496 = vadd.f32 %v2263, %v2495
  %v2497 = vpop.f32.mrb[0].mxu0
  %v2498 = vadd.f32 %v2265, %v2497
  %2499 = vdwg.mxu0
  %v2500 = vpack.c.bf16 %v2340, %v2334
  %v2501 = vpack.c.bf16 %v2342, %v2336
  %v2502 = vpack.c.bf16 %v2352, %v2346
  %v2503 = vpack.c.bf16 %v2354, %v2348
  %v2504 = vpack.c.bf16 %v2364, %v2358
  %v2505 = vpack.c.bf16 %v2366, %v2360
  %v2506 = vpack.c.bf16 %v2376, %v2370
  %v2507 = vpack.c.bf16 %v2378, %v2372
  %v2508 = vpack.c.bf16 %v2388, %v2382
  %v2509 = vpack.c.bf16 %v2390, %v2384
  %v2510 = vpack.c.bf16 %v2400, %v2394
  %v2511 = vpack.c.bf16 %v2402, %v2396
  %v2512 = vpack.c.bf16 %v2412, %v2406
  %v2513 = vpack.c.bf16 %v2414, %v2408
  %v2514 = vpack.c.bf16 %v2424, %v2418
  %v2515 = vpack.c.bf16 %v2426, %v2420
  %v2516 = vpack.c.bf16 %v2436, %v2430
  %v2517 = vpack.c.bf16 %v2438, %v2432
  %v2518 = vpack.c.bf16 %v2448, %v2442
  %v2519 = vpack.c.bf16 %v2450, %v2444
  %v2520 = vpack.c.bf16 %v2460, %v2454
  %v2521 = vpack.c.bf16 %v2462, %v2456
  %v2522 = vpack.c.bf16 %v2472, %v2466
  %v2523 = vpack.c.bf16 %v2474, %v2468
  %v2524 = vpack.c.bf16 %v2484, %v2478
  %v2525 = vpack.c.bf16 %v2486, %v2480
  %v2526 = vpack.c.bf16 %v2496, %v2490
  %v2527 = vpack.c.bf16 %v2498, %v2492
  %v2556 = vunpack.c.l.b16 %v2500
  %v2557 = vunpack.c.l.b16 %v2501
  %v2558 = vunpack.c.h.b16 %v2500
  %v2559 = vunpack.c.h.b16 %v2501
  %v2560 = vunpack.c.l.b16 %v2502
  %v2561 = vunpack.c.l.b16 %v2503
  %v2562 = vunpack.c.h.b16 %v2502
  %v2563 = vunpack.c.h.b16 %v2503
  %v2564 = vunpack.c.l.b16 %v2504
  %v2565 = vunpack.c.l.b16 %v2505
  %v2566 = vunpack.c.h.b16 %v2504
  %v2567 = vunpack.c.h.b16 %v2505
  %v2568 = vunpack.c.l.b16 %v2506
  %v2569 = vunpack.c.l.b16 %v2507
  %v2570 = vunpack.c.h.b16 %v2506
  %v2571 = vunpack.c.h.b16 %v2507
  %v2572 = vunpack.c.l.b16 %v2508
  %v2573 = vunpack.c.l.b16 %v2509
  %v2574 = vunpack.c.h.b16 %v2508
  %v2575 = vunpack.c.h.b16 %v2509
  %v2576 = vunpack.c.l.b16 %v2510
  %v2577 = vunpack.c.l.b16 %v2511
  %v2578 = vunpack.c.h.b16 %v2510
  %v2579 = vunpack.c.h.b16 %v2511
  %v2580 = vunpack.c.l.b16 %v2512
  %v2581 = vunpack.c.l.b16 %v2513
  %v2582 = vunpack.c.h.b16 %v2512
  %v2583 = vunpack.c.h.b16 %v2513
  %v2584 = vunpack.c.l.b16 %v2514
  %v2585 = vunpack.c.l.b16 %v2515
  %v2586 = vunpack.c.h.b16 %v2514
  %v2587 = vunpack.c.h.b16 %v2515
  %v2588 = vunpack.c.l.b16 %v2516
  %v2589 = vunpack.c.l.b16 %v2517
  %v2590 = vunpack.c.h.b16 %v2516
  %v2591 = vunpack.c.h.b16 %v2517
  %v2592 = vunpack.c.l.b16 %v2518
  %v2593 = vunpack.c.l.b16 %v2519
  %v2594 = vunpack.c.h.b16 %v2518
  %v2595 = vunpack.c.h.b16 %v2519
  %v2596 = vunpack.c.l.b16 %v2520
  %v2597 = vunpack.c.l.b16 %v2521
  %v2598 = vunpack.c.h.b16 %v2520
  %v2599 = vunpack.c.h.b16 %v2521
  %v2600 = vunpack.c.l.b16 %v2522
  %v2601 = vunpack.c.l.b16 %v2523
  %v2602 = vunpack.c.h.b16 %v2522
  %v2603 = vunpack.c.h.b16 %v2523
  %v2604 = vunpack.c.l.b16 %v2524
  %v2605 = vunpack.c.l.b16 %v2525
  %v2606 = vunpack.c.h.b16 %v2524
  %v2607 = vunpack.c.h.b16 %v2525
  %v2608 = vunpack.c.l.b16 %v2526
  %v2609 = vunpack.c.l.b16 %v2527
  %v2610 = vunpack.c.h.b16 %v2526
  %v2611 = vunpack.c.h.b16 %v2527
  %v2612 = vpack.c.b16 %v2557, %v2556
  %v2613 = vpack.c.b16 %v2559, %v2558
  %v2614 = vpack.c.b16 %v2561, %v2560
  %v2615 = vpack.c.b16 %v2563, %v2562
  %v2616 = vpack.c.b16 %v2565, %v2564
  %v2617 = vpack.c.b16 %v2567, %v2566
  %v2618 = vpack.c.b16 %v2569, %v2568
  %v2619 = vpack.c.b16 %v2571, %v2570
  %v2620 = vpack.c.b16 %v2573, %v2572
  %v2621 = vpack.c.b16 %v2575, %v2574
  %v2622 = vpack.c.b16 %v2577, %v2576
  %v2623 = vpack.c.b16 %v2579, %v2578
  %v2624 = vpack.c.b16 %v2581, %v2580
  %v2625 = vpack.c.b16 %v2583, %v2582
  %v2626 = vpack.c.b16 %v2585, %v2584
  %v2627 = vpack.c.b16 %v2587, %v2586
  %v2628 = vpack.c.b16 %v2589, %v2588
  %v2629 = vpack.c.b16 %v2591, %v2590
  %v2630 = vpack.c.b16 %v2593, %v2592
  %v2631 = vpack.c.b16 %v2595, %v2594
  %v2632 = vpack.c.b16 %v2597, %v2596
  %v2633 = vpack.c.b16 %v2599, %v2598
  %v2634 = vpack.c.b16 %v2601, %v2600
  %v2635 = vpack.c.b16 %v2603, %v2602
  %v2636 = vpack.c.b16 %v2605, %v2604
  %v2637 = vpack.c.b16 %v2607, %v2606
  %v2638 = vpack.c.b16 %v2609, %v2608
  %v2639 = vpack.c.b16 %v2611, %v2610
  %vm2668 = vcmask 1043456
  %vm2669 = vcmask 556036
  %vm2670 = vmor %vm2669, %vm2668
  %2671 = vst.msk [vmem:[%s4] sm:$0xff] %vm2670, %v2612
  %2672 = vst.msk [vmem:[%s4 + $0x8] sm:$0xff] %vm2670, %v2613
  %2673 = vst.msk [vmem:[%s4 + $0x10] sm:$0xff] %vm2670, %v2614
  %2674 = vst.msk [vmem:[%s4 + $0x18] sm:$0xff] %vm2670, %v2615
  %2675 = vst.msk [vmem:[%s4 + $0x20] sm:$0xff] %vm2670, %v2616
  %2676 = vst.msk [vmem:[%s4 + $0x28] sm:$0xff] %vm2670, %v2617
  %2677 = vst.msk [vmem:[%s4 + $0x30] sm:$0xff] %vm2670, %v2618
  %2678 = vst.msk [vmem:[%s4 + $0x38] sm:$0xff] %vm2670, %v2619
  %2679 = vst.msk [vmem:[%s4 + $0x40] sm:$0xff] %vm2670, %v2620
  %2680 = vst.msk [vmem:[%s4 + $0x48] sm:$0xff] %vm2670, %v2621
  %2681 = vst.msk [vmem:[%s4 + $0x50] sm:$0xff] %vm2670, %v2622
  %2682 = vst.msk [vmem:[%s4 + $0x58] sm:$0xff] %vm2670, %v2623
  %2683 = vst.msk [vmem:[%s4 + $0x60] sm:$0xff] %vm2670, %v2624
  %2684 = vst.msk [vmem:[%s4 + $0x68] sm:$0xff] %vm2670, %v2625
  %2685 = vst.msk [vmem:[%s4 + $0x70] sm:$0xff] %vm2670, %v2626
  %2686 = vst.msk [vmem:[%s4 + $0x78] sm:$0xff] %vm2670, %v2627
  %2687 = vst.msk [vmem:[%s4 + $0x80] sm:$0xff] %vm2670, %v2628
  %2688 = vst.msk [vmem:[%s4 + $0x88] sm:$0xff] %vm2670, %v2629
  %2689 = vst.msk [vmem:[%s4 + $0x90] sm:$0xff] %vm2670, %v2630
  %2690 = vst.msk [vmem:[%s4 + $0x98] sm:$0xff] %vm2670, %v2631
  %2691 = vst.msk [vmem:[%s4 + $0xa0] sm:$0xff] %vm2670, %v2632
  %2692 = vst.msk [vmem:[%s4 + $0xa8] sm:$0xff] %vm2670, %v2633
  %2693 = vst.msk [vmem:[%s4 + $0xb0] sm:$0xff] %vm2670, %v2634
  %2694 = vst.msk [vmem:[%s4 + $0xb8] sm:$0xff] %vm2670, %v2635
  %2695 = vst.msk [vmem:[%s4 + $0xc0] sm:$0xff] %vm2670, %v2636
  %2696 = vst.msk [vmem:[%s4 + $0xc8] sm:$0xff] %vm2670, %v2637
  %2697 = vst.msk [vmem:[%s4 + $0xd0] sm:$0xff] %vm2670, %v2638
  %2698 = vst.msk [vmem:[%s4 + $0xd8] sm:$0xff] %vm2670, %v2639
  // Predicated region
  $region18: #{se_block.1} parent=0 // pred_check
    _
  $region19: #{se_block.1} parent=0 // pred_check_branch
    %2700 = sbr.rel (0) target = $region21
  $region20: #{se_block.1} parent=0 // pred_region
    _
  $region21: #{se_block.1} parent=0 // pred_fallthru
    _
  // Predicated region
  $region22: #{se_block.1} parent=0 // pred_check
    _
  $region23: #{se_block.1} parent=0 // pred_check_branch
    %2702 = sbr.rel (0) target = $region25
  $region24: #{se_block.1} parent=0 // pred_region
    _
  $region25: #{se_block.1} parent=0 // pred_fallthru
    _

</llo_original>
